<compile_context>
chip_gen: v7x
topology: tpu7x:2x2x1
jax: 0.10.0
libtpu: 0.0.40
codegen_flags: <defaults>
</compile_context>

<pallas_src>
import functools

import jax
import jax.numpy as jnp
from jax import lax
from jax.experimental import pallas as pl
from jax.experimental.pallas import tpu as pltpu

MASK_BIAS = -1e30           # applied in f32 only (would overflow bf16)
MXU_DTYPE = jnp.bfloat16    # matmul operand dtype; accumulation stays f32
FEAT_DTYPE = jnp.bfloat16   # storage dtype of projected features


# ---------------------------------------------------------------------------
# Hardware-derived configuration (v5e/v6e: 128 MiB VMEM, v7x: 64 MiB per TC)
# ---------------------------------------------------------------------------
@functools.lru_cache(maxsize=None)
def _vmem_capacity_bytes():
    try:
        cap = getattr(pltpu.get_tpu_info(), "vmem_capacity_bytes", None)
        if cap:
            return int(cap)
    except Exception:
        pass
    return 0  # unknown


def _vmem_limit_bytes():
    cap = _vmem_capacity_bytes()
    if cap and cap <= 64 * 1024 * 1024:
        return 40 * 1024 * 1024          # v7x-class: 64 MiB physical per TC
    if cap:
        return 96 * 1024 * 1024          # v5e / v6e: 128 MiB physical
    return 48 * 1024 * 1024              # unknown: conservative


def _attention_dst_tile_target():
    # Smaller dst tiles on 64 MiB parts bound the (tm, N) softmax temporaries.
    cap = _vmem_capacity_bytes()
    if cap and cap <= 64 * 1024 * 1024:
        return 64
    return 256


def _tile(n, target, align):
    """Tile size: full `n` when it fits the target, else an aligned target.

    Grids use pl.cdiv, so `n` never needs to divide the tile; the edge block
    is padded by Pallas (reads unspecified, writes masked), which is safe here
    because every output row / column depends only on its own inputs.
    """
    if n <= target:
        return n
    return max(align, (target // align) * align)


def _const_spec(block_shape, index_map, single_buffer):
    """BlockSpec for a grid-invariant block.

    These blocks never change across grid steps, so double-buffering them only
    doubles their VMEM footprint; request single buffering when supported.
    """
    if single_buffer:
        return pl.BlockSpec(block_shape, index_map, pipeline_mode=pl.Buffered(1))
    return pl.BlockSpec(block_shape, index_map)


def _single_buffer_fallback(fn):
    """Retry without pipeline_mode=pl.Buffered(1) if this build rejects it."""
    @functools.wraps(fn)
    def wrapper(*args, **kwargs):
        try:
            return fn(*args, single_buffer=True, **kwargs)
        except Exception:
            return fn(*args, single_buffer=False, **kwargs)
    return wrapper


# ---------------------------------------------------------------------------
# Kernel 1: feature projection  feat = h @ W  (+ fused per-head el emission)
# ---------------------------------------------------------------------------
def project_kernel(h_ref, w_ref, al_ref, feat_ref, el_ref, *, heads, out_feat):
    h = h_ref[...].astype(MXU_DTYPE)
    w = w_ref[...].astype(MXU_DTYPE)
    feat = jnp.dot(h, w, preferred_element_type=jnp.float32)   # (tm, heads*F) f32
    feat_ref[...] = feat.astype(feat_ref.dtype)                # bf16 storage

    # el[h, r] = <feat[r, head h], attn_l[h]>; emitted here (reuses the feat
    # tile already in vregs) so the attention kernel never recomputes it per
    # dst tile.  Computed from the f32 intermediate for accuracy.
    el_rows = []
    for hd in range(heads):
        f_h = feat[:, hd * out_feat:(hd + 1) * out_feat]       # (tm, F) f32
        al_h = al_ref[hd:hd + 1, :]                            # (1, F)  f32
        el_rows.append(lax.dot_general(al_h, f_h, (((1,), (1,)), ((), ())),
                                       preferred_element_type=jnp.float32))
    el_ref[...] = jnp.concatenate(el_rows, axis=0)             # (heads, tm)


@_single_buffer_fallback
def gat_project(h, w, al, *, heads, out_feat, single_buffer, row_tile_target=512):
    n, in_dim = h.shape
    out_cols = heads * out_feat
    # Row tile doubles as el's lane axis -> keep it a multiple of 128 (or full n).
    tm = _tile(n, row_tile_target, 128)
    grid = (pl.cdiv(n, tm),)
    kernel = functools.partial(project_kernel, heads=heads, out_feat=out_feat)
    feat, el = pl.pallas_call(
        kernel,
        out_shape=(jax.ShapeDtypeStruct((n, out_cols), FEAT_DTYPE),
                   jax.ShapeDtypeStruct((heads, n), jnp.float32)),
        grid=grid,
        in_specs=[pl.BlockSpec((tm, in_dim), lambda i: (i, 0)),
                  _const_spec((in_dim, out_cols), lambda i: (0, 0), single_buffer),
                  _const_spec((heads, out_feat), lambda i: (0, 0), single_buffer)],
        out_specs=[pl.BlockSpec((tm, out_cols), lambda i: (i, 0)),
                   pl.BlockSpec((heads, tm), lambda i: (0, i))],
        compiler_params=pltpu.CompilerParams(
            dimension_semantics=("parallel",),
            vmem_limit_bytes=_vmem_limit_bytes()),
        cost_estimate=pl.CostEstimate(
            flops=2 * n * in_dim * out_cols + 2 * n * out_cols,
            transcendentals=0,
            bytes_accessed=4 * (n * in_dim + in_dim * out_cols)
                           + 2 * n * out_cols + 4 * n * heads),
    )(h, w, al)
    return feat, el


# ---------------------------------------------------------------------------
# Kernel 2: masked multi-head attention + aggregation, tiled over dst rows
# ---------------------------------------------------------------------------
def gat_attention_kernel(feat_ref, fdst_ref, adj_ref, el_ref, ar_ref, out_ref, *,
                         heads, out_feat, negative_slope, apply_elu, reduce_mean):
    # Hoisted boolean edge mask -- no persistent (TM, N) f32 bias tensor.
    adj_mask = adj_ref[...] > 0                                     # (TM, N) bool

    # Static Python loop over heads (heads is small: 4 / 1); each head's
    # (TM, N) temporaries are dead before the next head's are produced.
    head_outs = []
    for hd in range(heads):
        lo = hd * out_feat
        f_h = feat_ref[:, lo:lo + out_feat]                         # (N, F) bf16
        f_dst = fdst_ref[:, lo:lo + out_feat].astype(jnp.float32)   # (TM, F)
        ar_h = ar_ref[hd:hd + 1, :]                                 # (1, F)
        el_row = el_ref[hd:hd + 1, :]                               # (1, N) precomputed

        # er for the dst tile: VPU multiply + XLU reduce (no 1-lane matmul).
        er_col = jnp.sum(f_dst * ar_h, axis=-1, keepdims=True)      # (TM, 1)

        e = er_col + el_row                                         # (TM, N) f32
        e = jnp.where(e > 0, e, negative_slope * e)                 # LeakyReLU
        e = jnp.where(adj_mask, e, jnp.float32(MASK_BIAS))          # mask non-edges

        m = jnp.max(e, axis=-1, keepdims=True)
        p = jnp.exp(e - m)                                          # unnormalized
        denom = jnp.sum(p, axis=-1, keepdims=True)
        # Aggregate first, normalize the small (TM, F) result afterwards:
        # saves a full-width (TM, N) VPU multiply per head.
        o = jnp.dot(p.astype(f_h.dtype), f_h,
                    preferred_element_type=jnp.float32)             # (TM, F)
        o = o * pl.reciprocal(denom, approx=True)                   # EUP slot
        if apply_elu:
            # clamp before exp to avoid inf intermediates on the dropped branch
            o = jnp.where(o > 0, o, jnp.exp(jnp.minimum(o, 0.0)) - 1.0)
        head_outs.append(o)

    if reduce_mean:
        acc = head_outs[0]
        for o in head_outs[1:]:
            acc = acc + o
        out_ref[...] = acc * jnp.float32(1.0 / heads)               # .mean(1)
    else:
        out_ref[...] = jnp.concatenate(head_outs, axis=-1)          # flatten(1)


@_single_buffer_fallback
def gat_attention(feat, el, adj_i8, ar, *, heads, out_feat, negative_slope,
                  apply_elu, reduce_mean, single_buffer):
    n = feat.shape[0]
    cols = heads * out_feat
    tm = _tile(n, _attention_dst_tile_target(), 8)
    grid = (pl.cdiv(n, tm),)
    out_cols = out_feat if reduce_mean else cols
    kernel = functools.partial(
        gat_attention_kernel, heads=heads, out_feat=out_feat,
        negative_slope=negative_slope, apply_elu=apply_elu,
        reduce_mean=reduce_mean)
    return pl.pallas_call(
        kernel,
        out_shape=jax.ShapeDtypeStruct((n, out_cols), jnp.float32),
        grid=grid,
        in_specs=[
            _const_spec((n, cols), lambda i: (0, 0), single_buffer),   # full src feat, resident
            pl.BlockSpec((tm, cols), lambda i: (i, 0)),                # dst-tile feat (for er)
            pl.BlockSpec((tm, n), lambda i: (i, 0)),                   # int8 adj dst tile
            _const_spec((heads, n), lambda i: (0, 0), single_buffer),  # precomputed el
            _const_spec((heads, out_feat), lambda i: (0, 0), single_buffer),
        ],
        out_specs=pl.BlockSpec((tm, out_cols), lambda i: (i, 0)),      # lane-dense store
        compiler_params=pltpu.CompilerParams(
            dimension_semantics=("parallel",),
            vmem_limit_bytes=_vmem_limit_bytes()),
        cost_estimate=pl.CostEstimate(
            flops=2 * heads * n * n * out_feat + 6 * heads * n * n,
            transcendentals=heads * n * n,
            bytes_accessed=n * n + 2 * n * cols + 4 * heads * n + 4 * n * out_cols),
    )(feat, feat, adj_i8, el, ar)


# ---------------------------------------------------------------------------
# Kernel 3: InnerProductDecoder  rec = z @ z.T  (2-D output-tiled)
# ---------------------------------------------------------------------------
def inner_product_kernel(zi_ref, zj_ref, out_ref):
    zi = zi_ref[...].astype(MXU_DTYPE)
    zj = zj_ref[...].astype(MXU_DTYPE)
    out_ref[...] = lax.dot_general(zi, zj, (((1,), (1,)), ((), ())),
                                   preferred_element_type=jnp.float32)


def inner_product_decode(z, *, row_tile_target=256, col_tile_target=512):
    n, d = z.shape
    tm = _tile(n, row_tile_target, 8)
    tn = _tile(n, col_tile_target, 128)
    grid = (pl.cdiv(n, tm), pl.cdiv(n, tn))
    return pl.pallas_call(
        inner_product_kernel,
        out_shape=jax.ShapeDtypeStruct((n, n), jnp.float32),
        grid=grid,
        in_specs=[pl.BlockSpec((tm, d), lambda i, j: (i, 0)),
                  pl.BlockSpec((tn, d), lambda i, j: (j, 0))],
        out_specs=pl.BlockSpec((tm, tn), lambda i, j: (i, j)),
        compiler_params=pltpu.CompilerParams(
            dimension_semantics=("parallel", "parallel"),
            vmem_limit_bytes=_vmem_limit_bytes()),
        cost_estimate=pl.CostEstimate(
            flops=2 * n * n * d,
            transcendentals=0,
            bytes_accessed=4 * (2 * n * d + n * n)),
    )(z, z)


# ---------------------------------------------------------------------------
# Full forward: GAT encoder -> z_mean -> inner-product reconstructions
# ---------------------------------------------------------------------------
def gat_model_ae_forward(x, adj, params, *, heads, num_hidden, out_dim,
                         negative_slope):
    """GATModelAE.forward: returns (z_mean, reconstructions)."""
    # NOTE: nodes with zero incident edges (no self-loop) would get uniform
    # attention over all nodes instead of DGL's zero aggregation; the caller
    # is expected to include self-loops (as the test does).
    adj_i8 = (adj > 0).astype(jnp.int8)     # 1-byte mask -> 1/4 adjacency DMA bytes
    h = x
    # hidden GAT layers (ELU activation, concat heads)
    for l in range(len(heads) - 1):
        w, al, ar = params[l]
        feat, el = gat_project(h, w, al, heads=heads[l], out_feat=num_hidden)
        h = gat_attention(feat, el, adj_i8, ar, heads=heads[l],
                          out_feat=num_hidden, negative_slope=negative_slope,
                          apply_elu=True, reduce_mean=False)
    # output GAT layer (no activation, mean over heads)
    w, al, ar = params[-1]
    feat, el = gat_project(h, w, al, heads=heads[-1], out_feat=out_dim)
    z = gat_attention(feat, el, adj_i8, ar, heads=heads[-1], out_feat=out_dim,
                      negative_slope=negative_slope, apply_elu=False,
                      reduce_mean=True)
    rec = inner_product_decode(z)
    return z, rec


if __name__ == "__main__":
    key = jax.random.PRNGKey(0)
    keys = jax.random.split(key, 8)

    # Small shapes consistent with the module's constructor; N=256 exercises
    # the dst-tile grid while staying tiny.
    N = 256              # number of graph nodes
    in_dim = 64
    num_hidden = 32
    out_dim = 16
    num_layers = 1       # -> 1 hidden GAT layer + 1 output GAT layer
    heads = [4, 1]       # heads per layer (len == num_layers + 1)
    negative_slope = 0.2

    # Node features.
    x = jax.random.normal(keys[0], (N, in_dim), dtype=jnp.float32)

    # Random symmetric adjacency with self-loops, dense {0,1} mask adj[dst, src].
    a = (jax.random.uniform(keys[1], (N, N)) < 0.05).astype(jnp.float32)
    adj = jnp.clip(a + a.T + jnp.eye(N, dtype=jnp.float32), 0.0, 1.0)

    # Deterministic synthetic parameters (DGL GATConv: bias-free fc + attn_l/attn_r).
    # Layer 0: in_dim -> num_hidden with heads[0] heads.
    w0 = 0.1 * jax.random.normal(keys[2], (in_dim, heads[0] * num_hidden), jnp.float32)
    al0 = 0.1 * jax.random.normal(keys[3], (heads[0], num_hidden), jnp.float32)
    ar0 = 0.1 * jax.random.normal(keys[4], (heads[0], num_hidden), jnp.float32)
    # Output layer: heads[0]*num_hidden -> out_dim with heads[1] heads.
    w1 = 0.1 * jax.random.normal(keys[5], (heads[0] * num_hidden, heads[1] * out_dim),
                                 jnp.float32)
    al1 = 0.1 * jax.random.normal(keys[6], (heads[1], out_dim), jnp.float32)
    ar1 = 0.1 * jax.random.normal(keys[7], (heads[1], out_dim), jnp.float32)

    params = [(w0, al0, ar0), (w1, al1, ar1)]

    z_mean, reconstructions = gat_model_ae_forward(
        x, adj, params, heads=heads, num_hidden=num_hidden, out_dim=out_dim,
        negative_slope=negative_slope)

    jax.block_until_ready((z_mean, reconstructions))
    assert z_mean.shape == (N, out_dim)
    assert reconstructions.shape == (N, N)
    assert bool(jnp.all(jnp.isfinite(z_mean)))
    assert bool(jnp.all(jnp.isfinite(reconstructions)))
    print("KERNEL_OK")
</pallas_src>

<mosaic_0001>
module attributes {stable_mosaic.version = 11 : i64} {
  func.func @project_kernel(%arg0: i32, %arg1: memref<256x64xf32, #tpu.memory_space<vmem>>, %arg2: memref<64x128xf32, #tpu.memory_space<vmem>>, %arg3: memref<4x32xf32, #tpu.memory_space<vmem>>, %arg4: memref<256x128xbf16, #tpu.memory_space<vmem>>, %arg5: memref<4x256xf32, #tpu.memory_space<vmem>>) attributes {dimension_semantics = [#tpu.dimension_semantics<parallel>], iteration_bounds = array<i64: 1>, scalar_prefetch = 0 : i64, scratch_operands = 0 : i64, tpu.core_type = #tpu.core_type<tc>, window_params = [{transform_indices = @transform_0, window_bounds = array<i64: 256, 64>}, {pipeline_mode = #tpu.pipeline_mode<synchronous>, transform_indices = @transform_1, window_bounds = array<i64: 64, 128>}, {pipeline_mode = #tpu.pipeline_mode<synchronous>, transform_indices = @transform_2, window_bounds = array<i64: 4, 32>}, {transform_indices = @transform_3, window_bounds = array<i64: 256, 128>}, {transform_indices = @transform_4, window_bounds = array<i64: 4, 256>}]} {
    %c0 = arith.constant 0 : index
    %c0_0 = arith.constant 0 : index
    %0 = vector.load %arg1[%c0, %c0_0] : memref<256x64xf32, #tpu.memory_space<vmem>>, vector<256x64xf32>
    %1 = arith.truncf %0 : vector<256x64xf32> to vector<256x64xbf16>
    %c0_1 = arith.constant 0 : index
    %c0_2 = arith.constant 0 : index
    %2 = vector.load %arg2[%c0_1, %c0_2] : memref<64x128xf32, #tpu.memory_space<vmem>>, vector<64x128xf32>
    %3 = arith.truncf %2 : vector<64x128xf32> to vector<64x128xbf16>
    %cst = arith.constant dense<0.000000e+00> : vector<256x128xf32>
    %4 = tpu.matmul %1, %3, %cst {dimension_numbers = #tpu.dot_dimension_numbers<[1], [0], [0], [1], [0, 0, 1, 1], [], []>} : vector<256x64xbf16>, vector<64x128xbf16>, vector<256x128xf32> -> vector<256x128xf32>
    %5 = arith.truncf %4 : vector<256x128xf32> to vector<256x128xbf16>
    %c0_3 = arith.constant 0 : index
    %c0_4 = arith.constant 0 : index
    %6 = vector.load %arg4[%c0_3, %c0_4] : memref<256x128xbf16, #tpu.memory_space<vmem>>, vector<256x128xbf16>
    tpu.vector_store %arg4[%c0_3, %c0_4], %5 {strides = array<i32>} : memref<256x128xbf16, #tpu.memory_space<vmem>>, vector<256x128xbf16>,
    %7 = vector.extract_strided_slice %4 {offsets = [0, 0], sizes = [256, 32], strides = [1, 1]} : vector<256x128xf32> to vector<256x32xf32>
    %c0_5 = arith.constant 0 : index
    %c0_6 = arith.constant 0 : index
    %8 = vector.load %arg3[%c0_5, %c0_6] : memref<4x32xf32, #tpu.memory_space<vmem>>, vector<1x32xf32>
    %cst_7 = arith.constant dense<0.000000e+00> : vector<1x256xf32>
    %9 = tpu.matmul %8, %7, %cst_7 {dimension_numbers = #tpu.dot_dimension_numbers<[1], [1], [0], [0], [0, 0, 1, 0], [], []>} : vector<1x32xf32>, vector<256x32xf32>, vector<1x256xf32> -> vector<1x256xf32>
    %10 = vector.extract_strided_slice %4 {offsets = [0, 32], sizes = [256, 32], strides = [1, 1]} : vector<256x128xf32> to vector<256x32xf32>
    %c1 = arith.constant 1 : index
    %c0_8 = arith.constant 0 : index
    %11 = vector.load %arg3[%c1, %c0_8] : memref<4x32xf32, #tpu.memory_space<vmem>>, vector<1x32xf32>
    %cst_9 = arith.constant dense<0.000000e+00> : vector<1x256xf32>
    %12 = tpu.matmul %11, %10, %cst_9 {dimension_numbers = #tpu.dot_dimension_numbers<[1], [1], [0], [0], [0, 0, 1, 0], [], []>} : vector<1x32xf32>, vector<256x32xf32>, vector<1x256xf32> -> vector<1x256xf32>
    %13 = vector.extract_strided_slice %4 {offsets = [0, 64], sizes = [256, 32], strides = [1, 1]} : vector<256x128xf32> to vector<256x32xf32>
    %c2 = arith.constant 2 : index
    %c0_10 = arith.constant 0 : index
    %14 = vector.load %arg3[%c2, %c0_10] : memref<4x32xf32, #tpu.memory_space<vmem>>, vector<1x32xf32>
    %cst_11 = arith.constant dense<0.000000e+00> : vector<1x256xf32>
    %15 = tpu.matmul %14, %13, %cst_11 {dimension_numbers = #tpu.dot_dimension_numbers<[1], [1], [0], [0], [0, 0, 1, 0], [], []>} : vector<1x32xf32>, vector<256x32xf32>, vector<1x256xf32> -> vector<1x256xf32>
    %16 = vector.extract_strided_slice %4 {offsets = [0, 96], sizes = [256, 32], strides = [1, 1]} : vector<256x128xf32> to vector<256x32xf32>
    %c3 = arith.constant 3 : index
    %c0_12 = arith.constant 0 : index
    %17 = vector.load %arg3[%c3, %c0_12] : memref<4x32xf32, #tpu.memory_space<vmem>>, vector<1x32xf32>
    %cst_13 = arith.constant dense<0.000000e+00> : vector<1x256xf32>
    %18 = tpu.matmul %17, %16, %cst_13 {dimension_numbers = #tpu.dot_dimension_numbers<[1], [1], [0], [0], [0, 0, 1, 0], [], []>} : vector<1x32xf32>, vector<256x32xf32>, vector<1x256xf32> -> vector<1x256xf32>
    %19 = tpu.concatenate %9, %12, %15, %18 in 0 : vector<1x256xf32>, vector<1x256xf32>, vector<1x256xf32>, vector<1x256xf32> -> vector<4x256xf32>
    %c0_14 = arith.constant 0 : index
    %c0_15 = arith.constant 0 : index
    %20 = vector.load %arg5[%c0_14, %c0_15] : memref<4x256xf32, #tpu.memory_space<vmem>>, vector<4x256xf32>
    tpu.vector_store %arg5[%c0_14, %c0_15], %19 {strides = array<i32>} : memref<4x256xf32, #tpu.memory_space<vmem>>, vector<4x256xf32>,
    return
  }
  func.func @transform_0(%arg0: i32) -> (i32, i32) {
    %c0_i32 = arith.constant 0 : i32
    %c0_i32_0 = arith.constant 0 : i32
    return %arg0, %c0_i32 : i32, i32
  }
  func.func @transform_1(%arg0: i32) -> (i32, i32) {
    %c0_i32 = arith.constant 0 : i32
    %c0_i32_0 = arith.constant 0 : i32
    %c0_i32_1 = arith.constant 0 : i32
    return %c0_i32, %c0_i32_0 : i32, i32
  }
  func.func @transform_2(%arg0: i32) -> (i32, i32) {
    %c0_i32 = arith.constant 0 : i32
    %c0_i32_0 = arith.constant 0 : i32
    %c0_i32_1 = arith.constant 0 : i32
    return %c0_i32, %c0_i32_0 : i32, i32
  }
  func.func @transform_3(%arg0: i32) -> (i32, i32) {
    %c0_i32 = arith.constant 0 : i32
    %c0_i32_0 = arith.constant 0 : i32
    return %arg0, %c0_i32 : i32, i32
  }
  func.func @transform_4(%arg0: i32) -> (i32, i32) {
    %c0_i32 = arith.constant 0 : i32
    %c0_i32_0 = arith.constant 0 : i32
    return %c0_i32, %arg0 : i32, i32
  }
}

module attributes {stable_mosaic.version = 11 : i64} {
  func.func @project_kernel(%arg0: i32, %arg1: memref<256x64xf32, #tpu.memory_space<vmem>>, %arg2: memref<64x128xf32, #tpu.memory_space<vmem>>, %arg3: memref<4x32xf32, #tpu.memory_space<vmem>>, %arg4: memref<256x128xbf16, #tpu.memory_space<vmem>>, %arg5: memref<4x256xf32, #tpu.memory_space<vmem>>) attributes {dimension_semantics = [#tpu.dimension_semantics<parallel>], iteration_bounds = array<i64: 1>, scalar_prefetch = 0 : i64, scratch_operands = 0 : i64, tpu.core_type = #tpu.core_type<tc>, window_params = [{transform_indices = @transform_0, window_bounds = array<i64: 256, 64>}, {pipeline_mode = #tpu.pipeline_mode<synchronous>, transform_indices = @transform_1, window_bounds = array<i64: 64, 128>}, {pipeline_mode = #tpu.pipeline_mode<synchronous>, transform_indices = @transform_2, window_bounds = array<i64: 4, 32>}, {transform_indices = @transform_3, window_bounds = array<i64: 256, 128>}, {transform_indices = @transform_4, window_bounds = array<i64: 4, 256>}]} {
    %c0 = arith.constant 0 : index
    %c0_0 = arith.constant 0 : index
    %0 = vector.load %arg1[%c0, %c0_0] : memref<256x64xf32, #tpu.memory_space<vmem>>, vector<256x64xf32>
    %1 = arith.truncf %0 : vector<256x64xf32> to vector<256x64xbf16>
    %c0_1 = arith.constant 0 : index
    %c0_2 = arith.constant 0 : index
    %2 = vector.load %arg2[%c0_1, %c0_2] : memref<64x128xf32, #tpu.memory_space<vmem>>, vector<64x128xf32>
    %3 = arith.truncf %2 : vector<64x128xf32> to vector<64x128xbf16>
    %cst = arith.constant dense<0.000000e+00> : vector<256x128xf32>
    %4 = tpu.matmul %1, %3, %cst {dimension_numbers = #tpu.dot_dimension_numbers<[1], [0], [0], [1], [0, 0, 1, 1], [], []>} : vector<256x64xbf16>, vector<64x128xbf16>, vector<256x128xf32> -> vector<256x128xf32>
    %5 = arith.truncf %4 : vector<256x128xf32> to vector<256x128xbf16>
    %c0_3 = arith.constant 0 : index
    %c0_4 = arith.constant 0 : index
    %6 = vector.load %arg4[%c0_3, %c0_4] : memref<256x128xbf16, #tpu.memory_space<vmem>>, vector<256x128xbf16>
    tpu.vector_store %arg4[%c0_3, %c0_4], %5 {strides = array<i32>} : memref<256x128xbf16, #tpu.memory_space<vmem>>, vector<256x128xbf16>,
    %7 = vector.extract_strided_slice %4 {offsets = [0, 0], sizes = [256, 32], strides = [1, 1]} : vector<256x128xf32> to vector<256x32xf32>
    %c0_5 = arith.constant 0 : index
    %c0_6 = arith.constant 0 : index
    %8 = vector.load %arg3[%c0_5, %c0_6] : memref<4x32xf32, #tpu.memory_space<vmem>>, vector<1x32xf32>
    %cst_7 = arith.constant dense<0.000000e+00> : vector<1x256xf32>
    %9 = tpu.matmul %8, %7, %cst_7 {dimension_numbers = #tpu.dot_dimension_numbers<[1], [1], [0], [0], [0, 0, 1, 0], [], []>} : vector<1x32xf32>, vector<256x32xf32>, vector<1x256xf32> -> vector<1x256xf32>
    %10 = vector.extract_strided_slice %4 {offsets = [0, 32], sizes = [256, 32], strides = [1, 1]} : vector<256x128xf32> to vector<256x32xf32>
    %c1 = arith.constant 1 : index
    %c0_8 = arith.constant 0 : index
    %11 = vector.load %arg3[%c1, %c0_8] : memref<4x32xf32, #tpu.memory_space<vmem>>, vector<1x32xf32>
    %cst_9 = arith.constant dense<0.000000e+00> : vector<1x256xf32>
    %12 = tpu.matmul %11, %10, %cst_9 {dimension_numbers = #tpu.dot_dimension_numbers<[1], [1], [0], [0], [0, 0, 1, 0], [], []>} : vector<1x32xf32>, vector<256x32xf32>, vector<1x256xf32> -> vector<1x256xf32>
    %13 = vector.extract_strided_slice %4 {offsets = [0, 64], sizes = [256, 32], strides = [1, 1]} : vector<256x128xf32> to vector<256x32xf32>
    %c2 = arith.constant 2 : index
    %c0_10 = arith.constant 0 : index
    %14 = vector.load %arg3[%c2, %c0_10] : memref<4x32xf32, #tpu.memory_space<vmem>>, vector<1x32xf32>
    %cst_11 = arith.constant dense<0.000000e+00> : vector<1x256xf32>
    %15 = tpu.matmul %14, %13, %cst_11 {dimension_numbers = #tpu.dot_dimension_numbers<[1], [1], [0], [0], [0, 0, 1, 0], [], []>} : vector<1x32xf32>, vector<256x32xf32>, vector<1x256xf32> -> vector<1x256xf32>
    %16 = vector.extract_strided_slice %4 {offsets = [0, 96], sizes = [256, 32], strides = [1, 1]} : vector<256x128xf32> to vector<256x32xf32>
    %c3 = arith.constant 3 : index
    %c0_12 = arith.constant 0 : index
    %17 = vector.load %arg3[%c3, %c0_12] : memref<4x32xf32, #tpu.memory_space<vmem>>, vector<1x32xf32>
    %cst_13 = arith.constant dense<0.000000e+00> : vector<1x256xf32>
    %18 = tpu.matmul %17, %16, %cst_13 {dimension_numbers = #tpu.dot_dimension_numbers<[1], [1], [0], [0], [0, 0, 1, 0], [], []>} : vector<1x32xf32>, vector<256x32xf32>, vector<1x256xf32> -> vector<1x256xf32>
    %19 = tpu.concatenate %9, %12, %15, %18 in 0 : vector<1x256xf32>, vector<1x256xf32>, vector<1x256xf32>, vector<1x256xf32> -> vector<4x256xf32>
    %c0_14 = arith.constant 0 : index
    %c0_15 = arith.constant 0 : index
    %20 = vector.load %arg5[%c0_14, %c0_15] : memref<4x256xf32, #tpu.memory_space<vmem>>, vector<4x256xf32>
    tpu.vector_store %arg5[%c0_14, %c0_15], %19 {strides = array<i32>} : memref<4x256xf32, #tpu.memory_space<vmem>>, vector<4x256xf32>,
    return
  }
  func.func @transform_0(%arg0: i32) -> (i32, i32) {
    %c0_i32 = arith.constant 0 : i32
    %c0_i32_0 = arith.constant 0 : i32
    return %arg0, %c0_i32 : i32, i32
  }
  func.func @transform_1(%arg0: i32) -> (i32, i32) {
    %c0_i32 = arith.constant 0 : i32
    %c0_i32_0 = arith.constant 0 : i32
    %c0_i32_1 = arith.constant 0 : i32
    return %c0_i32, %c0_i32_0 : i32, i32
  }
  func.func @transform_2(%arg0: i32) -> (i32, i32) {
    %c0_i32 = arith.constant 0 : i32
    %c0_i32_0 = arith.constant 0 : i32
    %c0_i32_1 = arith.constant 0 : i32
    return %c0_i32, %c0_i32_0 : i32, i32
  }
  func.func @transform_3(%arg0: i32) -> (i32, i32) {
    %c0_i32 = arith.constant 0 : i32
    %c0_i32_0 = arith.constant 0 : i32
    return %arg0, %c0_i32 : i32, i32
  }
  func.func @transform_4(%arg0: i32) -> (i32, i32) {
    %c0_i32 = arith.constant 0 : i32
    %c0_i32_0 = arith.constant 0 : i32
    return %c0_i32, %arg0 : i32, i32
  }
}

</mosaic_0001>

<llo_original>
// kernel: tpu_custom_call.1
$region0: #{tpu_custom_call.1}
  #allocation0 [shape = 'u32[]', space=smem, size = 0x4, offset = 0x4, fixed_abs, tag = 'smem constant byte address 0x4 - core index']
  #allocation1 [shape = 'u32[144,128]{1,0:T(1,128)}', space=vmem, size = 0x12000, scoped, tag = 'internal scratch']
  %s0 = inlined_call_operand.vmem [shape: f32[256,64], index: 0, kind: input, shape index: {}]
  %s1 = inlined_call_operand.vmem [shape: f32[64,128], index: 1, kind: input, shape index: {}]
  %s2 = inlined_call_operand.vmem [shape: f32[4,32], index: 2, kind: input, shape index: {}]
  %s3 = inlined_call_operand.hbm [shape: bf16[256,128], index: 3, kind: output, shape index: {0}]
  %s4 = inlined_call_operand.hbm [shape: f32[4,256], index: 4, kind: output, shape index: {1}]
  %5 = xla_tuple %s3, %s4
  %s6 = sld [smem:[#allocation0]]
  $region30: #{tpu_custom_call.1} parent=0
    _
  %s8 = ssub.s32 1, %s6
  %s9 = scalar_select 0, %s8, %s6
  $region1: #{tpu_custom_call.1} parent=0
    #allocation2 [shape = 'u8[65536]{0}', space=vmem, size = 0x10000, scoped, tag = 'output window, operand 0, single buffered']
    #allocation3 [shape = 's32[1]{0}', space=sflag, size = 0x4, scoped, tag = 'scoped memory for tpu_custom_call.1']
    #allocation4 [shape = 'u8[4096]{0}', space=vmem, size = 0x1000, scoped, tag = 'output window, operand 1, single buffered']
    #allocation5 [shape = 's32[1]{0}', space=sflag, size = 0x4, scoped, tag = 'scoped memory for tpu_custom_call.1']
    %10 = vsyncpa [#allocation3], 0
    %11 = vsyncpa [#allocation5], 0
    // Predicated region
    $region2: #{tpu_custom_call.1} parent=1 // pred_check
      _
    $region3: #{tpu_custom_call.1} parent=1 // pred_check_branch
      %13 = sbr.rel (0) target = $region5
    $region4: #{tpu_custom_call.1} parent=1 // pred_region
      _
    $region5: #{tpu_custom_call.1} parent=1 // pred_fallthru
      _
    // Predicated region
    $region6: #{tpu_custom_call.1} parent=1 // pred_check
      _
    $region7: #{tpu_custom_call.1} parent=1 // pred_check_branch
      %15 = sbr.rel (0) target = $region9
    $region8: #{tpu_custom_call.1} parent=1 // pred_region
      _
    $region9: #{tpu_custom_call.1} parent=1 // pred_fallthru
      _
    // Predicated region
    $region10: #{tpu_custom_call.1} parent=1 // pred_check
      _
    $region11: #{tpu_custom_call.1} parent=1 // pred_check_branch
      %17 = sbr.rel (0) target = $region13
    $region12: #{tpu_custom_call.1} parent=1 // pred_region
      _
    $region13: #{tpu_custom_call.1} parent=1 // pred_fallthru
      _
    %v19 = vld [vmem:[%s0] sm:$0xff]
    %v20 = vld [vmem:[%s0 + $0x8] sm:$0xff]
    %v21 = vld [vmem:[%s0 + $0x10] sm:$0xff]
    %v22 = vld [vmem:[%s0 + $0x18] sm:$0xff]
    %v23 = vld [vmem:[%s0 + $0x20] sm:$0xff]
    %v24 = vld [vmem:[%s0 + $0x28] sm:$0xff]
    %v25 = vld [vmem:[%s0 + $0x30] sm:$0xff]
    %v26 = vld [vmem:[%s0 + $0x38] sm:$0xff]
    %v27 = vld [vmem:[%s0 + $0x40] sm:$0xff]
    %v28 = vld [vmem:[%s0 + $0x48] sm:$0xff]
    %v29 = vld [vmem:[%s0 + $0x50] sm:$0xff]
    %v30 = vld [vmem:[%s0 + $0x58] sm:$0xff]
    %v31 = vld [vmem:[%s0 + $0x60] sm:$0xff]
    %v32 = vld [vmem:[%s0 + $0x68] sm:$0xff]
    %v33 = vld [vmem:[%s0 + $0x70] sm:$0xff]
    %v34 = vld [vmem:[%s0 + $0x78] sm:$0xff]
    %v35 = vld [vmem:[%s0 + $0x80] sm:$0xff]
    %v36 = vld [vmem:[%s0 + $0x88] sm:$0xff]
    %v37 = vld [vmem:[%s0 + $0x90] sm:$0xff]
    %v38 = vld [vmem:[%s0 + $0x98] sm:$0xff]
    %v39 = vld [vmem:[%s0 + $0xa0] sm:$0xff]
    %v40 = vld [vmem:[%s0 + $0xa8] sm:$0xff]
    %v41 = vld [vmem:[%s0 + $0xb0] sm:$0xff]
    %v42 = vld [vmem:[%s0 + $0xb8] sm:$0xff]
    %v43 = vld [vmem:[%s0 + $0xc0] sm:$0xff]
    %v44 = vld [vmem:[%s0 + $0xc8] sm:$0xff]
    %v45 = vld [vmem:[%s0 + $0xd0] sm:$0xff]
    %v46 = vld [vmem:[%s0 + $0xd8] sm:$0xff]
    %v47 = vld [vmem:[%s0 + $0xe0] sm:$0xff]
    %v48 = vld [vmem:[%s0 + $0xe8] sm:$0xff]
    %v49 = vld [vmem:[%s0 + $0xf0] sm:$0xff]
    %v50 = vld [vmem:[%s0 + $0xf8] sm:$0xff]
    %v51 = vpack.c.bf16 %v20, %v19
    %v52 = vpack.c.bf16 %v22, %v21
    %v53 = vpack.c.bf16 %v24, %v23
    %v54 = vpack.c.bf16 %v26, %v25
    %v55 = vpack.c.bf16 %v28, %v27
    %v56 = vpack.c.bf16 %v30, %v29
    %v57 = vpack.c.bf16 %v32, %v31
    %v58 = vpack.c.bf16 %v34, %v33
    %v59 = vpack.c.bf16 %v36, %v35
    %v60 = vpack.c.bf16 %v38, %v37
    %v61 = vpack.c.bf16 %v40, %v39
    %v62 = vpack.c.bf16 %v42, %v41
    %v63 = vpack.c.bf16 %v44, %v43
    %v64 = vpack.c.bf16 %v46, %v45
    %v65 = vpack.c.bf16 %v48, %v47
    %v66 = vpack.c.bf16 %v50, %v49
    %v67 = vld [vmem:[%s1] sm:$0xff]
    %v68 = vld [vmem:[%s1 + $0x8] sm:$0xff]
    %v69 = vld [vmem:[%s1 + $0x10] sm:$0xff]
    %v70 = vld [vmem:[%s1 + $0x18] sm:$0xff]
    %v71 = vld [vmem:[%s1 + $0x20] sm:$0xff]
    %v72 = vld [vmem:[%s1 + $0x28] sm:$0xff]
    %v73 = vld [vmem:[%s1 + $0x30] sm:$0xff]
    %v74 = vld [vmem:[%s1 + $0x38] sm:$0xff]
    %v75 = vpack.c.bf16 %v68, %v67
    %v76 = vpack.c.bf16 %v70, %v69
    %v77 = vpack.c.bf16 %v72, %v71
    %v78 = vpack.c.bf16 %v74, %v73
    %vm79 = vcmask 523264
    %v81 = vsel %vm79, %v51, 0
    %v84 = vsel %vm79, %v52, 0
    %v87 = vsel %vm79, %v53, 0
    %v90 = vsel %vm79, %v54, 0
    %v93 = vsel %vm79, %v55, 0
    %v96 = vsel %vm79, %v56, 0
    %v99 = vsel %vm79, %v57, 0
    %v102 = vsel %vm79, %v58, 0
    %v105 = vsel %vm79, %v59, 0
    %v108 = vsel %vm79, %v60, 0
    %v111 = vsel %vm79, %v61, 0
    %v114 = vsel %vm79, %v62, 0
    %v117 = vsel %vm79, %v63, 0
    %v120 = vsel %vm79, %v64, 0
    %v123 = vsel %vm79, %v65, 0
    %v126 = vsel %vm79, %v66, 0
    %128 = vmatprep.subr.bf16.mxu0 0
    %129 = vmatpush1.bf16.msra.mxu0 %v75
    %130 = vmatprep.subr.bf16.mxu0 0
    %131 = vmatpush1.bf16.msra.mxu0 %v76
    %132 = vmatprep.subr.bf16.mxu0 0
    %133 = vmatpush1.bf16.msra.mxu0 %v77
    %134 = vmatprep.subr.bf16.mxu0 0
    %135 = vmatpush1.bf16.msra.mxu0 %v78
    %136 = vmatprep.subr.bf16.mxu0 0
    %137 = vmatpush1.bf16.msra.mxu0 0
    %138 = vmatprep.subr.bf16.mxu0 0
    %139 = vmatpush1.bf16.msra.mxu0 0
    %140 = vmatprep.subr.bf16.mxu0 0
    %141 = vmatpush1.bf16.msra.mxu0 0
    %142 = vmatprep.subr.bf16.mxu0 0
    %143 = vmatpush1.bf16.msra.mxu0 0
    %144 = vmatprep.subr.bf16.mxu0 0
    %145 = vmatpush1.bf16.msra.mxu0 0
    %146 = vmatprep.subr.bf16.mxu0 0
    %147 = vmatpush1.bf16.msra.mxu0 0
    %148 = vmatprep.subr.bf16.mxu0 0
    %149 = vmatpush1.bf16.msra.mxu0 0
    %150 = vmatprep.subr.bf16.mxu0 0
    %151 = vmatpush1.bf16.msra.mxu0 0
    %152 = vmatprep.subr.bf16.mxu0 0
    %153 = vmatpush1.bf16.msra.mxu0 0
    %154 = vmatprep.subr.bf16.mxu0 0
    %155 = vmatpush1.bf16.msra.mxu0 0
    %156 = vmatprep.subr.bf16.mxu0 0
    %157 = vmatpush1.bf16.msra.mxu0 0
    %158 = vmatprep.subr.bf16.mxu0 0
    %159 = vmatpush1.bf16.msra.mxu0 0
    %160 = vmatprep.mubr.bf16.mxu0 0
    %161 = vmatmul.mubr.bf16.gmra.mrb[0].mxu0 %v81
    %v162 = vpop.f32.mrb[0].mxu0
    %v163 = vadd.f32 0.0, %v162
    %v164 = vpop.f32.mrb[0].mxu0
    %v165 = vpop.f32.mrb[0].mxu0
    %v166 = vadd.f32 0.0, %v165
    %v167 = vpop.f32.mrb[0].mxu0
    %168 = vmatprep.mubr.bf16.mxu0 0
    %169 = vmatmul.mubr.bf16.gmra.mrb[0].mxu0 %v84
    %v170 = vpop.f32.mrb[0].mxu0
    %v171 = vadd.f32 0.0, %v170
    %v172 = vpop.f32.mrb[0].mxu0
    %v173 = vpop.f32.mrb[0].mxu0
    %v174 = vadd.f32 0.0, %v173
    %v175 = vpop.f32.mrb[0].mxu0
    %176 = vmatprep.mubr.bf16.mxu0 0
    %177 = vmatmul.mubr.bf16.gmra.mrb[0].mxu0 %v87
    %v178 = vpop.f32.mrb[0].mxu0
    %v179 = vadd.f32 0.0, %v178
    %v180 = vpop.f32.mrb[0].mxu0
    %v181 = vpop.f32.mrb[0].mxu0
    %v182 = vadd.f32 0.0, %v181
    %v183 = vpop.f32.mrb[0].mxu0
    %184 = vmatprep.mubr.bf16.mxu0 0
    %185 = vmatmul.mubr.bf16.gmra.mrb[0].mxu0 %v90
    %v186 = vpop.f32.mrb[0].mxu0
    %v187 = vadd.f32 0.0, %v186
    %v188 = vpop.f32.mrb[0].mxu0
    %v189 = vpop.f32.mrb[0].mxu0
    %v190 = vadd.f32 0.0, %v189
    %v191 = vpop.f32.mrb[0].mxu0
    %192 = vmatprep.mubr.bf16.mxu0 0
    %193 = vmatmul.mubr.bf16.gmra.mrb[0].mxu0 %v93
    %v194 = vpop.f32.mrb[0].mxu0
    %v195 = vadd.f32 0.0, %v194
    %v196 = vpop.f32.mrb[0].mxu0
    %v197 = vpop.f32.mrb[0].mxu0
    %v198 = vadd.f32 0.0, %v197
    %v199 = vpop.f32.mrb[0].mxu0
    %200 = vmatprep.mubr.bf16.mxu0 0
    %201 = vmatmul.mubr.bf16.gmra.mrb[0].mxu0 %v96
    %v202 = vpop.f32.mrb[0].mxu0
    %v203 = vadd.f32 0.0, %v202
    %v204 = vpop.f32.mrb[0].mxu0
    %v205 = vpop.f32.mrb[0].mxu0
    %v206 = vadd.f32 0.0, %v205
    %v207 = vpop.f32.mrb[0].mxu0
    %208 = vmatprep.mubr.bf16.mxu0 0
    %209 = vmatmul.mubr.bf16.gmra.mrb[0].mxu0 %v99
    %v210 = vpop.f32.mrb[0].mxu0
    %v211 = vadd.f32 0.0, %v210
    %v212 = vpop.f32.mrb[0].mxu0
    %v213 = vpop.f32.mrb[0].mxu0
    %v214 = vadd.f32 0.0, %v213
    %v215 = vpop.f32.mrb[0].mxu0
    %216 = vmatprep.mubr.bf16.mxu0 0
    %217 = vmatmul.mubr.bf16.gmra.mrb[0].mxu0 %v102
    %v218 = vpop.f32.mrb[0].mxu0
    %v219 = vadd.f32 0.0, %v218
    %v220 = vpop.f32.mrb[0].mxu0
    %v221 = vpop.f32.mrb[0].mxu0
    %v222 = vadd.f32 0.0, %v221
    %v223 = vpop.f32.mrb[0].mxu0
    %224 = vmatprep.mubr.bf16.mxu0 0
    %225 = vmatmul.mubr.bf16.gmra.mrb[0].mxu0 %v105
    %v226 = vpop.f32.mrb[0].mxu0
    %v227 = vadd.f32 0.0, %v226
    %v228 = vpop.f32.mrb[0].mxu0
    %v229 = vpop.f32.mrb[0].mxu0
    %v230 = vadd.f32 0.0, %v229
    %v231 = vpop.f32.mrb[0].mxu0
    %232 = vmatprep.mubr.bf16.mxu0 0
    %233 = vmatmul.mubr.bf16.gmra.mrb[0].mxu0 %v108
    %v234 = vpop.f32.mrb[0].mxu0
    %v235 = vadd.f32 0.0, %v234
    %v236 = vpop.f32.mrb[0].mxu0
    %v237 = vpop.f32.mrb[0].mxu0
    %v238 = vadd.f32 0.0, %v237
    %v239 = vpop.f32.mrb[0].mxu0
    %240 = vmatprep.mubr.bf16.mxu0 0
    %241 = vmatmul.mubr.bf16.gmra.mrb[0].mxu0 %v111
    %v242 = vpop.f32.mrb[0].mxu0
    %v243 = vadd.f32 0.0, %v242
    %v244 = vpop.f32.mrb[0].mxu0
    %v245 = vpop.f32.mrb[0].mxu0
    %v246 = vadd.f32 0.0, %v245
    %v247 = vpop.f32.mrb[0].mxu0
    %248 = vmatprep.mubr.bf16.mxu0 0
    %249 = vmatmul.mubr.bf16.gmra.mrb[0].mxu0 %v114
    %v250 = vpop.f32.mrb[0].mxu0
    %v251 = vadd.f32 0.0, %v250
    %v252 = vpop.f32.mrb[0].mxu0
    %v253 = vpop.f32.mrb[0].mxu0
    %v254 = vadd.f32 0.0, %v253
    %v255 = vpop.f32.mrb[0].mxu0
    %256 = vmatprep.mubr.bf16.mxu0 0
    %257 = vmatmul.mubr.bf16.gmra.mrb[0].mxu0 %v117
    %v258 = vpop.f32.mrb[0].mxu0
    %v259 = vadd.f32 0.0, %v258
    %v260 = vpop.f32.mrb[0].mxu0
    %v261 = vpop.f32.mrb[0].mxu0
    %v262 = vadd.f32 0.0, %v261
    %v263 = vpop.f32.mrb[0].mxu0
    %264 = vmatprep.mubr.bf16.mxu0 0
    %265 = vmatmul.mubr.bf16.gmra.mrb[0].mxu0 %v120
    %v266 = vpop.f32.mrb[0].mxu0
    %v267 = vadd.f32 0.0, %v266
    %v268 = vpop.f32.mrb[0].mxu0
    %v269 = vpop.f32.mrb[0].mxu0
    %v270 = vadd.f32 0.0, %v269
    %v271 = vpop.f32.mrb[0].mxu0
    %272 = vmatprep.mubr.bf16.mxu0 0
    %273 = vmatmul.mubr.bf16.gmra.mrb[0].mxu0 %v123
    %v274 = vpop.f32.mrb[0].mxu0
    %v275 = vadd.f32 0.0, %v274
    %v276 = vpop.f32.mrb[0].mxu0
    %v277 = vpop.f32.mrb[0].mxu0
    %v278 = vadd.f32 0.0, %v277
    %v279 = vpop.f32.mrb[0].mxu0
    %280 = vmatprep.mubr.bf16.mxu0 0
    %281 = vmatmul.mubr.bf16.gmra.mrb[0].mxu0 %v126
    %v282 = vpop.f32.mrb[0].mxu0
    %v283 = vadd.f32 0.0, %v282
    %v284 = vpop.f32.mrb[0].mxu0
    %v285 = vpop.f32.mrb[0].mxu0
    %v286 = vadd.f32 0.0, %v285
    %v287 = vpop.f32.mrb[0].mxu0
    %288 = vdwg.mxu0
    %v289 = vpack.c.bf16 %v166, %v163
    %v290 = vpack.c.bf16 %v174, %v171
    %v291 = vpack.c.bf16 %v182, %v179
    %v292 = vpack.c.bf16 %v190, %v187
    %v293 = vpack.c.bf16 %v198, %v195
    %v294 = vpack.c.bf16 %v206, %v203
    %v295 = vpack.c.bf16 %v214, %v211
    %v296 = vpack.c.bf16 %v222, %v219
    %v297 = vpack.c.bf16 %v230, %v227
    %v298 = vpack.c.bf16 %v238, %v235
    %v299 = vpack.c.bf16 %v246, %v243
    %v300 = vpack.c.bf16 %v254, %v251
    %v301 = vpack.c.bf16 %v262, %v259
    %v302 = vpack.c.bf16 %v270, %v267
    %v303 = vpack.c.bf16 %v278, %v275
    %v304 = vpack.c.bf16 %v286, %v283
    %v321 = vunpack.c.l.b16 %v289
    %v322 = vunpack.c.h.b16 %v289
    %v323 = vunpack.c.l.b16 %v290
    %v324 = vunpack.c.h.b16 %v290
    %v325 = vunpack.c.l.b16 %v291
    %v326 = vunpack.c.h.b16 %v291
    %v327 = vunpack.c.l.b16 %v292
    %v328 = vunpack.c.h.b16 %v292
    %v329 = vunpack.c.l.b16 %v293
    %v330 = vunpack.c.h.b16 %v293
    %v331 = vunpack.c.l.b16 %v294
    %v332 = vunpack.c.h.b16 %v294
    %v333 = vunpack.c.l.b16 %v295
    %v334 = vunpack.c.h.b16 %v295
    %v335 = vunpack.c.l.b16 %v296
    %v336 = vunpack.c.h.b16 %v296
    %v337 = vunpack.c.l.b16 %v297
    %v338 = vunpack.c.h.b16 %v297
    %v339 = vunpack.c.l.b16 %v298
    %v340 = vunpack.c.h.b16 %v298
    %v341 = vunpack.c.l.b16 %v299
    %v342 = vunpack.c.h.b16 %v299
    %v343 = vunpack.c.l.b16 %v300
    %v344 = vunpack.c.h.b16 %v300
    %v345 = vunpack.c.l.b16 %v301
    %v346 = vunpack.c.h.b16 %v301
    %v347 = vunpack.c.l.b16 %v302
    %v348 = vunpack.c.h.b16 %v302
    %v349 = vunpack.c.l.b16 %v303
    %v350 = vunpack.c.h.b16 %v303
    %v351 = vunpack.c.l.b16 %v304
    %v352 = vunpack.c.h.b16 %v304
    %v353 = vpack.c.b16 %v321, %v321
    %v354 = vpack.c.b16 %v322, %v322
    %v355 = vpack.c.b16 %v323, %v323
    %v356 = vpack.c.b16 %v324, %v324
    %v357 = vpack.c.b16 %v325, %v325
    %v358 = vpack.c.b16 %v326, %v326
    %v359 = vpack.c.b16 %v327, %v327
    %v360 = vpack.c.b16 %v328, %v328
    %v361 = vpack.c.b16 %v329, %v329
    %v362 = vpack.c.b16 %v330, %v330
    %v363 = vpack.c.b16 %v331, %v331
    %v364 = vpack.c.b16 %v332, %v332
    %v365 = vpack.c.b16 %v333, %v333
    %v366 = vpack.c.b16 %v334, %v334
    %v367 = vpack.c.b16 %v335, %v335
    %v368 = vpack.c.b16 %v336, %v336
    %v369 = vpack.c.b16 %v337, %v337
    %v370 = vpack.c.b16 %v338, %v338
    %v371 = vpack.c.b16 %v339, %v339
    %v372 = vpack.c.b16 %v340, %v340
    %v373 = vpack.c.b16 %v341, %v341
    %v374 = vpack.c.b16 %v342, %v342
    %v375 = vpack.c.b16 %v343, %v343
    %v376 = vpack.c.b16 %v344, %v344
    %v377 = vpack.c.b16 %v345, %v345
    %v378 = vpack.c.b16 %v346, %v346
    %v379 = vpack.c.b16 %v347, %v347
    %v380 = vpack.c.b16 %v348, %v348
    %v381 = vpack.c.b16 %v349, %v349
    %v382 = vpack.c.b16 %v350, %v350
    %v383 = vpack.c.b16 %v351, %v351
    %v384 = vpack.c.b16 %v352, %v352
    %417 = vst [vmem:[#allocation2] sm:$0xf] %v353
    %418 = vst [vmem:[#allocation2 + $0x4] sm:$0xf] %v354
    %419 = vst [vmem:[#allocation2 + $0x8] sm:$0xf] %v355
    %420 = vst [vmem:[#allocation2 + $0xc] sm:$0xf] %v356
    %421 = vst [vmem:[#allocation2 + $0x10] sm:$0xf] %v357
    %422 = vst [vmem:[#allocation2 + $0x14] sm:$0xf] %v358
    %423 = vst [vmem:[#allocation2 + $0x18] sm:$0xf] %v359
    %424 = vst [vmem:[#allocation2 + $0x1c] sm:$0xf] %v360
    %425 = vst [vmem:[#allocation2 + $0x20] sm:$0xf] %v361
    %426 = vst [vmem:[#allocation2 + $0x24] sm:$0xf] %v362
    %427 = vst [vmem:[#allocation2 + $0x28] sm:$0xf] %v363
    %428 = vst [vmem:[#allocation2 + $0x2c] sm:$0xf] %v364
    %429 = vst [vmem:[#allocation2 + $0x30] sm:$0xf] %v365
    %430 = vst [vmem:[#allocation2 + $0x34] sm:$0xf] %v366
    %431 = vst [vmem:[#allocation2 + $0x38] sm:$0xf] %v367
    %432 = vst [vmem:[#allocation2 + $0x3c] sm:$0xf] %v368
    %433 = vst [vmem:[#allocation2 + $0x40] sm:$0xf] %v369
    %434 = vst [vmem:[#allocation2 + $0x44] sm:$0xf] %v370
    %435 = vst [vmem:[#allocation2 + $0x48] sm:$0xf] %v371
    %436 = vst [vmem:[#allocation2 + $0x4c] sm:$0xf] %v372
    %437 = vst [vmem:[#allocation2 + $0x50] sm:$0xf] %v373
    %438 = vst [vmem:[#allocation2 + $0x54] sm:$0xf] %v374
    %439 = vst [vmem:[#allocation2 + $0x58] sm:$0xf] %v375
    %440 = vst [vmem:[#allocation2 + $0x5c] sm:$0xf] %v376
    %441 = vst [vmem:[#allocation2 + $0x60] sm:$0xf] %v377
    %442 = vst [vmem:[#allocation2 + $0x64] sm:$0xf] %v378
    %443 = vst [vmem:[#allocation2 + $0x68] sm:$0xf] %v379
    %444 = vst [vmem:[#allocation2 + $0x6c] sm:$0xf] %v380
    %445 = vst [vmem:[#allocation2 + $0x70] sm:$0xf] %v381
    %446 = vst [vmem:[#allocation2 + $0x74] sm:$0xf] %v382
    %447 = vst [vmem:[#allocation2 + $0x78] sm:$0xf] %v383
    %448 = vst [vmem:[#allocation2 + $0x7c] sm:$0xf] %v384
    %v449 = vld [vmem:[%s2] sm:$0x1]
    %vm450 = vcmask 261120
    %v452 = vsel %vm450, %v449, 0
    %v455 = vsel %vm450, %v163, 0
    %v458 = vsel %vm450, %v166, 0
    %v461 = vsel %vm450, %v171, 0
    %v464 = vsel %vm450, %v174, 0
    %v467 = vsel %vm450, %v179, 0
    %v470 = vsel %vm450, %v182, 0
    %v473 = vsel %vm450, %v187, 0
    %v476 = vsel %vm450, %v190, 0
    %v479 = vsel %vm450, %v195, 0
    %v482 = vsel %vm450, %v198, 0
    %v485 = vsel %vm450, %v203, 0
    %v488 = vsel %vm450, %v206, 0
    %v491 = vsel %vm450, %v211, 0
    %v494 = vsel %vm450, %v214, 0
    %v497 = vsel %vm450, %v219, 0
    %v500 = vsel %vm450, %v222, 0
    %v503 = vsel %vm450, %v227, 0
    %v506 = vsel %vm450, %v230, 0
    %v509 = vsel %vm450, %v235, 0
    %v512 = vsel %vm450, %v238, 0
    %v515 = vsel %vm450, %v243, 0
    %v518 = vsel %vm450, %v246, 0
    %v521 = vsel %vm450, %v251, 0
    %v524 = vsel %vm450, %v254, 0
    %v527 = vsel %vm450, %v259, 0
    %v530 = vsel %vm450, %v262, 0
    %v533 = vsel %vm450, %v267, 0
    %v536 = vsel %vm450, %v270, 0
    %v539 = vsel %vm450, %v275, 0
    %v542 = vsel %vm450, %v278, 0
    %v545 = vsel %vm450, %v283, 0
    %v548 = vsel %vm450, %v286, 0
    %550 = vmatprep.subr.mxu0 0.0
    %551 = vmatpush1.xpose.msra.mxu0 %v455
    %552 = vmatprep.subr.mxu0 0.0
    %553 = vmatpush1.xpose.msra.mxu0 %v458
    %554 = vmatprep.subr.mxu0 0.0
    %555 = vmatpush1.xpose.msra.mxu0 %v461
    %556 = vmatprep.subr.mxu0 0.0
    %557 = vmatpush1.xpose.msra.mxu0 %v464
    %558 = vmatprep.subr.mxu0 0.0
    %559 = vmatpush1.xpose.msra.mxu0 %v467
    %560 = vmatprep.subr.mxu0 0.0
    %561 = vmatpush1.xpose.msra.mxu0 %v470
    %562 = vmatprep.subr.mxu0 0.0
    %563 = vmatpush1.xpose.msra.mxu0 %v473
    %564 = vmatprep.subr.mxu0 0.0
    %565 = vmatpush1.xpose.msra.mxu0 %v476
    %566 = vmatprep.subr.mxu0 0.0
    %567 = vmatpush1.xpose.msra.mxu0 %v479
    %568 = vmatprep.subr.mxu0 0.0
    %569 = vmatpush1.xpose.msra.mxu0 %v482
    %570 = vmatprep.subr.mxu0 0.0
    %571 = vmatpush1.xpose.msra.mxu0 %v485
    %572 = vmatprep.subr.mxu0 0.0
    %573 = vmatpush1.xpose.msra.mxu0 %v488
    %574 = vmatprep.subr.mxu0 0.0
    %575 = vmatpush1.xpose.msra.mxu0 %v491
    %576 = vmatprep.subr.mxu0 0.0
    %577 = vmatpush1.xpose.msra.mxu0 %v494
    %578 = vmatprep.subr.mxu0 0.0
    %579 = vmatpush1.xpose.msra.mxu0 %v497
    %580 = vmatprep.subr.mxu0 0.0
    %581 = vmatpush1.xpose.msra.mxu0 %v500
    %582 = vmatprep.subr.mxu0 0.0
    %583 = vmatpush1.xpose.msra.mxu0 %v503
    %584 = vmatprep.subr.mxu0 0.0
    %585 = vmatpush1.xpose.msra.mxu0 %v506
    %586 = vmatprep.subr.mxu0 0.0
    %587 = vmatpush1.xpose.msra.mxu0 %v509
    %588 = vmatprep.subr.mxu0 0.0
    %589 = vmatpush1.xpose.msra.mxu0 %v512
    %590 = vmatprep.subr.mxu0 0.0
    %591 = vmatpush1.xpose.msra.mxu0 %v515
    %592 = vmatprep.subr.mxu0 0.0
    %593 = vmatpush1.xpose.msra.mxu0 %v518
    %594 = vmatprep.subr.mxu0 0.0
    %595 = vmatpush1.xpose.msra.mxu0 %v521
    %596 = vmatprep.subr.mxu0 0.0
    %597 = vmatpush1.xpose.msra.mxu0 %v524
    %598 = vmatprep.subr.mxu0 0.0
    %599 = vmatpush1.xpose.msra.mxu0 %v527
    %600 = vmatprep.subr.mxu0 0.0
    %601 = vmatpush1.xpose.msra.mxu0 %v530
    %602 = vmatprep.subr.mxu0 0.0
    %603 = vmatpush1.xpose.msra.mxu0 %v533
    %604 = vmatprep.subr.mxu0 0.0
    %605 = vmatpush1.xpose.msra.mxu0 %v536
    %606 = vmatprep.subr.mxu0 0.0
    %607 = vmatpush1.xpose.msra.mxu0 %v539
    %608 = vmatprep.subr.mxu0 0.0
    %609 = vmatpush1.xpose.msra.mxu0 %v542
    %610 = vmatprep.subr.mxu0 0.0
    %611 = vmatpush1.xpose.msra.mxu0 %v545
    %612 = vmatprep.subr.mxu0 0.0
    %613 = vmatpush1.xpose.msra.mxu0 %v548
    %614 = vmatprep.mubr.f32.mxu0 0.0
    %615 = vmatmul.mubr.f32.gmra.mrb[0].mxu0 %v452
    %v616 = vpop.f32.mrb[0].mxu0
    %v617 = vadd.f32 0.0, %v616
    %v618 = vpop.f32.mrb[0].mxu0
    %v619 = vadd.f32 0.0, %v618
    %620 = vdwg.mxu0
    %v621 = vld [vmem:[%s2 + $0x1] sm:$0x1]
    %622 = vrot.lane.b32.xlu0 %v163, 96
    %v623 = vpop.permute.xlu0 %622
    %624 = vrot.lane.b32.xlu0 %v166, 96
    %v625 = vpop.permute.xlu0 %624
    %626 = vrot.lane.b32.xlu0 %v171, 96
    %v627 = vpop.permute.xlu0 %626
    %628 = vrot.lane.b32.xlu0 %v174, 96
    %v629 = vpop.permute.xlu0 %628
    %630 = vrot.lane.b32.xlu0 %v179, 96
    %v631 = vpop.permute.xlu0 %630
    %632 = vrot.lane.b32.xlu0 %v182, 96
    %v633 = vpop.permute.xlu0 %632
    %634 = vrot.lane.b32.xlu0 %v187, 96
    %v635 = vpop.permute.xlu0 %634
    %636 = vrot.lane.b32.xlu0 %v190, 96
    %v637 = vpop.permute.xlu0 %636
    %638 = vrot.lane.b32.xlu0 %v195, 96
    %v639 = vpop.permute.xlu0 %638
    %640 = vrot.lane.b32.xlu0 %v198, 96
    %v641 = vpop.permute.xlu0 %640
    %642 = vrot.lane.b32.xlu0 %v203, 96
    %v643 = vpop.permute.xlu0 %642
    %644 = vrot.lane.b32.xlu0 %v206, 96
    %v645 = vpop.permute.xlu0 %644
    %646 = vrot.lane.b32.xlu0 %v211, 96
    %v647 = vpop.permute.xlu0 %646
    %648 = vrot.lane.b32.xlu0 %v214, 96
    %v649 = vpop.permute.xlu0 %648
    %650 = vrot.lane.b32.xlu0 %v219, 96
    %v651 = vpop.permute.xlu0 %650
    %652 = vrot.lane.b32.xlu0 %v222, 96
    %v653 = vpop.permute.xlu0 %652
    %654 = vrot.lane.b32.xlu0 %v227, 96
    %v655 = vpop.permute.xlu0 %654
    %656 = vrot.lane.b32.xlu0 %v230, 96
    %v657 = vpop.permute.xlu0 %656
    %658 = vrot.lane.b32.xlu0 %v235, 96
    %v659 = vpop.permute.xlu0 %658
    %660 = vrot.lane.b32.xlu0 %v238, 96
    %v661 = vpop.permute.xlu0 %660
    %662 = vrot.lane.b32.xlu0 %v243, 96
    %v663 = vpop.permute.xlu0 %662
    %664 = vrot.lane.b32.xlu0 %v246, 96
    %v665 = vpop.permute.xlu0 %664
    %666 = vrot.lane.b32.xlu0 %v251, 96
    %v667 = vpop.permute.xlu0 %666
    %668 = vrot.lane.b32.xlu0 %v254, 96
    %v669 = vpop.permute.xlu0 %668
    %670 = vrot.lane.b32.xlu0 %v259, 96
    %v671 = vpop.permute.xlu0 %670
    %672 = vrot.lane.b32.xlu0 %v262, 96
    %v673 = vpop.permute.xlu0 %672
    %674 = vrot.lane.b32.xlu0 %v267, 96
    %v675 = vpop.permute.xlu0 %674
    %676 = vrot.lane.b32.xlu0 %v270, 96
    %v677 = vpop.permute.xlu0 %676
    %678 = vrot.lane.b32.xlu0 %v275, 96
    %v679 = vpop.permute.xlu0 %678
    %680 = vrot.lane.b32.xlu0 %v278, 96
    %v681 = vpop.permute.xlu0 %680
    %682 = vrot.lane.b32.xlu0 %v283, 96
    %v683 = vpop.permute.xlu0 %682
    %684 = vrot.lane.b32.xlu0 %v286, 96
    %v685 = vpop.permute.xlu0 %684
    %v687 = vsel %vm450, %v621, 0
    %v689 = vsel %vm450, %v623, 0
    %v691 = vsel %vm450, %v625, 0
    %v693 = vsel %vm450, %v627, 0
    %v695 = vsel %vm450, %v629, 0
    %v697 = vsel %vm450, %v631, 0
    %v699 = vsel %vm450, %v633, 0
    %v701 = vsel %vm450, %v635, 0
    %v703 = vsel %vm450, %v637, 0
    %v705 = vsel %vm450, %v639, 0
    %v707 = vsel %vm450, %v641, 0
    %v709 = vsel %vm450, %v643, 0
    %v711 = vsel %vm450, %v645, 0
    %v713 = vsel %vm450, %v647, 0
    %v715 = vsel %vm450, %v649, 0
    %v717 = vsel %vm450, %v651, 0
    %v719 = vsel %vm450, %v653, 0
    %v721 = vsel %vm450, %v655, 0
    %v723 = vsel %vm450, %v657, 0
    %v725 = vsel %vm450, %v659, 0
    %v727 = vsel %vm450, %v661, 0
    %v729 = vsel %vm450, %v663, 0
    %v731 = vsel %vm450, %v665, 0
    %v733 = vsel %vm450, %v667, 0
    %v735 = vsel %vm450, %v669, 0
    %v737 = vsel %vm450, %v671, 0
    %v739 = vsel %vm450, %v673, 0
    %v741 = vsel %vm450, %v675, 0
    %v743 = vsel %vm450, %v677, 0
    %v745 = vsel %vm450, %v679, 0
    %v747 = vsel %vm450, %v681, 0
    %v749 = vsel %vm450, %v683, 0
    %v751 = vsel %vm450, %v685, 0
    %753 = vmatprep.subr.mxu0 0.0
    %754 = vmatpush1.xpose.msra.mxu0 %v689
    %755 = vmatprep.subr.mxu0 0.0
    %756 = vmatpush1.xpose.msra.mxu0 %v691
    %757 = vmatprep.subr.mxu0 0.0
    %758 = vmatpush1.xpose.msra.mxu0 %v693
    %759 = vmatprep.subr.mxu0 0.0
    %760 = vmatpush1.xpose.msra.mxu0 %v695
    %761 = vmatprep.subr.mxu0 0.0
    %762 = vmatpush1.xpose.msra.mxu0 %v697
    %763 = vmatprep.subr.mxu0 0.0
    %764 = vmatpush1.xpose.msra.mxu0 %v699
    %765 = vmatprep.subr.mxu0 0.0
    %766 = vmatpush1.xpose.msra.mxu0 %v701
    %767 = vmatprep.subr.mxu0 0.0
    %768 = vmatpush1.xpose.msra.mxu0 %v703
    %769 = vmatprep.subr.mxu0 0.0
    %770 = vmatpush1.xpose.msra.mxu0 %v705
    %771 = vmatprep.subr.mxu0 0.0
    %772 = vmatpush1.xpose.msra.mxu0 %v707
    %773 = vmatprep.subr.mxu0 0.0
    %774 = vmatpush1.xpose.msra.mxu0 %v709
    %775 = vmatprep.subr.mxu0 0.0
    %776 = vmatpush1.xpose.msra.mxu0 %v711
    %777 = vmatprep.subr.mxu0 0.0
    %778 = vmatpush1.xpose.msra.mxu0 %v713
    %779 = vmatprep.subr.mxu0 0.0
    %780 = vmatpush1.xpose.msra.mxu0 %v715
    %781 = vmatprep.subr.mxu0 0.0
    %782 = vmatpush1.xpose.msra.mxu0 %v717
    %783 = vmatprep.subr.mxu0 0.0
    %784 = vmatpush1.xpose.msra.mxu0 %v719
    %785 = vmatprep.subr.mxu0 0.0
    %786 = vmatpush1.xpose.msra.mxu0 %v721
    %787 = vmatprep.subr.mxu0 0.0
    %788 = vmatpush1.xpose.msra.mxu0 %v723
    %789 = vmatprep.subr.mxu0 0.0
    %790 = vmatpush1.xpose.msra.mxu0 %v725
    %791 = vmatprep.subr.mxu0 0.0
    %792 = vmatpush1.xpose.msra.mxu0 %v727
    %793 = vmatprep.subr.mxu0 0.0
    %794 = vmatpush1.xpose.msra.mxu0 %v729
    %795 = vmatprep.subr.mxu0 0.0
    %796 = vmatpush1.xpose.msra.mxu0 %v731
    %797 = vmatprep.subr.mxu0 0.0
    %798 = vmatpush1.xpose.msra.mxu0 %v733
    %799 = vmatprep.subr.mxu0 0.0
    %800 = vmatpush1.xpose.msra.mxu0 %v735
    %801 = vmatprep.subr.mxu0 0.0
    %802 = vmatpush1.xpose.msra.mxu0 %v737
    %803 = vmatprep.subr.mxu0 0.0
    %804 = vmatpush1.xpose.msra.mxu0 %v739
    %805 = vmatprep.subr.mxu0 0.0
    %806 = vmatpush1.xpose.msra.mxu0 %v741
    %807 = vmatprep.subr.mxu0 0.0
    %808 = vmatpush1.xpose.msra.mxu0 %v743
    %809 = vmatprep.subr.mxu0 0.0
    %810 = vmatpush1.xpose.msra.mxu0 %v745
    %811 = vmatprep.subr.mxu0 0.0
    %812 = vmatpush1.xpose.msra.mxu0 %v747
    %813 = vmatprep.subr.mxu0 0.0
    %814 = vmatpush1.xpose.msra.mxu0 %v749
    %815 = vmatprep.subr.mxu0 0.0
    %816 = vmatpush1.xpose.msra.mxu0 %v751
    %817 = vmatprep.mubr.f32.mxu0 0.0
    %818 = vmatmul.mubr.f32.gmra.mrb[0].mxu0 %v687
    %v819 = vpop.f32.mrb[0].mxu0
    %v820 = vadd.f32 0.0, %v819
    %v821 = vpop.f32.mrb[0].mxu0
    %v822 = vadd.f32 0.0, %v821
    %823 = vdwg.mxu0
    %v824 = vld [vmem:[%s2 + $0x2] sm:$0x1]
    %825 = vrot.lane.b32.xlu0 %v163, 64
    %v826 = vpop.permute.xlu0 %825
    %827 = vrot.lane.b32.xlu0 %v166, 64
    %v828 = vpop.permute.xlu0 %827
    %829 = vrot.lane.b32.xlu0 %v171, 64
    %v830 = vpop.permute.xlu0 %829
    %831 = vrot.lane.b32.xlu0 %v174, 64
    %v832 = vpop.permute.xlu0 %831
    %833 = vrot.lane.b32.xlu0 %v179, 64
    %v834 = vpop.permute.xlu0 %833
    %835 = vrot.lane.b32.xlu0 %v182, 64
    %v836 = vpop.permute.xlu0 %835
    %837 = vrot.lane.b32.xlu0 %v187, 64
    %v838 = vpop.permute.xlu0 %837
    %839 = vrot.lane.b32.xlu0 %v190, 64
    %v840 = vpop.permute.xlu0 %839
    %841 = vrot.lane.b32.xlu0 %v195, 64
    %v842 = vpop.permute.xlu0 %841
    %843 = vrot.lane.b32.xlu0 %v198, 64
    %v844 = vpop.permute.xlu0 %843
    %845 = vrot.lane.b32.xlu0 %v203, 64
    %v846 = vpop.permute.xlu0 %845
    %847 = vrot.lane.b32.xlu0 %v206, 64
    %v848 = vpop.permute.xlu0 %847
    %849 = vrot.lane.b32.xlu0 %v211, 64
    %v850 = vpop.permute.xlu0 %849
    %851 = vrot.lane.b32.xlu0 %v214, 64
    %v852 = vpop.permute.xlu0 %851
    %853 = vrot.lane.b32.xlu0 %v219, 64
    %v854 = vpop.permute.xlu0 %853
    %855 = vrot.lane.b32.xlu0 %v222, 64
    %v856 = vpop.permute.xlu0 %855
    %857 = vrot.lane.b32.xlu0 %v227, 64
    %v858 = vpop.permute.xlu0 %857
    %859 = vrot.lane.b32.xlu0 %v230, 64
    %v860 = vpop.permute.xlu0 %859
    %861 = vrot.lane.b32.xlu0 %v235, 64
    %v862 = vpop.permute.xlu0 %861
    %863 = vrot.lane.b32.xlu0 %v238, 64
    %v864 = vpop.permute.xlu0 %863
    %865 = vrot.lane.b32.xlu0 %v243, 64
    %v866 = vpop.permute.xlu0 %865
    %867 = vrot.lane.b32.xlu0 %v246, 64
    %v868 = vpop.permute.xlu0 %867
    %869 = vrot.lane.b32.xlu0 %v251, 64
    %v870 = vpop.permute.xlu0 %869
    %871 = vrot.lane.b32.xlu0 %v254, 64
    %v872 = vpop.permute.xlu0 %871
    %873 = vrot.lane.b32.xlu0 %v259, 64
    %v874 = vpop.permute.xlu0 %873
    %875 = vrot.lane.b32.xlu0 %v262, 64
    %v876 = vpop.permute.xlu0 %875
    %877 = vrot.lane.b32.xlu0 %v267, 64
    %v878 = vpop.permute.xlu0 %877
    %879 = vrot.lane.b32.xlu0 %v270, 64
    %v880 = vpop.permute.xlu0 %879
    %881 = vrot.lane.b32.xlu0 %v275, 64
    %v882 = vpop.permute.xlu0 %881
    %883 = vrot.lane.b32.xlu0 %v278, 64
    %v884 = vpop.permute.xlu0 %883
    %885 = vrot.lane.b32.xlu0 %v283, 64
    %v886 = vpop.permute.xlu0 %885
    %887 = vrot.lane.b32.xlu0 %v286, 64
    %v888 = vpop.permute.xlu0 %887
    %v890 = vsel %vm450, %v824, 0
    %v892 = vsel %vm450, %v826, 0
    %v894 = vsel %vm450, %v828, 0
    %v896 = vsel %vm450, %v830, 0
    %v898 = vsel %vm450, %v832, 0
    %v900 = vsel %vm450, %v834, 0
    %v902 = vsel %vm450, %v836, 0
    %v904 = vsel %vm450, %v838, 0
    %v906 = vsel %vm450, %v840, 0
    %v908 = vsel %vm450, %v842, 0
    %v910 = vsel %vm450, %v844, 0
    %v912 = vsel %vm450, %v846, 0
    %v914 = vsel %vm450, %v848, 0
    %v916 = vsel %vm450, %v850, 0
    %v918 = vsel %vm450, %v852, 0
    %v920 = vsel %vm450, %v854, 0
    %v922 = vsel %vm450, %v856, 0
    %v924 = vsel %vm450, %v858, 0
    %v926 = vsel %vm450, %v860, 0
    %v928 = vsel %vm450, %v862, 0
    %v930 = vsel %vm450, %v864, 0
    %v932 = vsel %vm450, %v866, 0
    %v934 = vsel %vm450, %v868, 0
    %v936 = vsel %vm450, %v870, 0
    %v938 = vsel %vm450, %v872, 0
    %v940 = vsel %vm450, %v874, 0
    %v942 = vsel %vm450, %v876, 0
    %v944 = vsel %vm450, %v878, 0
    %v946 = vsel %vm450, %v880, 0
    %v948 = vsel %vm450, %v882, 0
    %v950 = vsel %vm450, %v884, 0
    %v952 = vsel %vm450, %v886, 0
    %v954 = vsel %vm450, %v888, 0
    %956 = vmatprep.subr.mxu0 0.0
    %957 = vmatpush1.xpose.msra.mxu0 %v892
    %958 = vmatprep.subr.mxu0 0.0
    %959 = vmatpush1.xpose.msra.mxu0 %v894
    %960 = vmatprep.subr.mxu0 0.0
    %961 = vmatpush1.xpose.msra.mxu0 %v896
    %962 = vmatprep.subr.mxu0 0.0
    %963 = vmatpush1.xpose.msra.mxu0 %v898
    %964 = vmatprep.subr.mxu0 0.0
    %965 = vmatpush1.xpose.msra.mxu0 %v900
    %966 = vmatprep.subr.mxu0 0.0
    %967 = vmatpush1.xpose.msra.mxu0 %v902
    %968 = vmatprep.subr.mxu0 0.0
    %969 = vmatpush1.xpose.msra.mxu0 %v904
    %970 = vmatprep.subr.mxu0 0.0
    %971 = vmatpush1.xpose.msra.mxu0 %v906
    %972 = vmatprep.subr.mxu0 0.0
    %973 = vmatpush1.xpose.msra.mxu0 %v908
    %974 = vmatprep.subr.mxu0 0.0
    %975 = vmatpush1.xpose.msra.mxu0 %v910
    %976 = vmatprep.subr.mxu0 0.0
    %977 = vmatpush1.xpose.msra.mxu0 %v912
    %978 = vmatprep.subr.mxu0 0.0
    %979 = vmatpush1.xpose.msra.mxu0 %v914
    %980 = vmatprep.subr.mxu0 0.0
    %981 = vmatpush1.xpose.msra.mxu0 %v916
    %982 = vmatprep.subr.mxu0 0.0
    %983 = vmatpush1.xpose.msra.mxu0 %v918
    %984 = vmatprep.subr.mxu0 0.0
    %985 = vmatpush1.xpose.msra.mxu0 %v920
    %986 = vmatprep.subr.mxu0 0.0
    %987 = vmatpush1.xpose.msra.mxu0 %v922
    %988 = vmatprep.subr.mxu0 0.0
    %989 = vmatpush1.xpose.msra.mxu0 %v924
    %990 = vmatprep.subr.mxu0 0.0
    %991 = vmatpush1.xpose.msra.mxu0 %v926
    %992 = vmatprep.subr.mxu0 0.0
    %993 = vmatpush1.xpose.msra.mxu0 %v928
    %994 = vmatprep.subr.mxu0 0.0
    %995 = vmatpush1.xpose.msra.mxu0 %v930
    %996 = vmatprep.subr.mxu0 0.0
    %997 = vmatpush1.xpose.msra.mxu0 %v932
    %998 = vmatprep.subr.mxu0 0.0
    %999 = vmatpush1.xpose.msra.mxu0 %v934
    %1000 = vmatprep.subr.mxu0 0.0
    %1001 = vmatpush1.xpose.msra.mxu0 %v936
    %1002 = vmatprep.subr.mxu0 0.0
    %1003 = vmatpush1.xpose.msra.mxu0 %v938
    %1004 = vmatprep.subr.mxu0 0.0
    %1005 = vmatpush1.xpose.msra.mxu0 %v940
    %1006 = vmatprep.subr.mxu0 0.0
    %1007 = vmatpush1.xpose.msra.mxu0 %v942
    %1008 = vmatprep.subr.mxu0 0.0
    %1009 = vmatpush1.xpose.msra.mxu0 %v944
    %1010 = vmatprep.subr.mxu0 0.0
    %1011 = vmatpush1.xpose.msra.mxu0 %v946
    %1012 = vmatprep.subr.mxu0 0.0
    %1013 = vmatpush1.xpose.msra.mxu0 %v948
    %1014 = vmatprep.subr.mxu0 0.0
    %1015 = vmatpush1.xpose.msra.mxu0 %v950
    %1016 = vmatprep.subr.mxu0 0.0
    %1017 = vmatpush1.xpose.msra.mxu0 %v952
    %1018 = vmatprep.subr.mxu0 0.0
    %1019 = vmatpush1.xpose.msra.mxu0 %v954
    %1020 = vmatprep.mubr.f32.mxu0 0.0
    %1021 = vmatmul.mubr.f32.gmra.mrb[0].mxu0 %v890
    %v1022 = vpop.f32.mrb[0].mxu0
    %v1023 = vadd.f32 0.0, %v1022
    %v1024 = vpop.f32.mrb[0].mxu0
    %v1025 = vadd.f32 0.0, %v1024
    %1026 = vdwg.mxu0
    %v1027 = vld [vmem:[%s2 + $0x3] sm:$0x1]
    %1028 = vrot.lane.b32.xlu0 %v163, 32
    %v1029 = vpop.permute.xlu0 %1028
    %1030 = vrot.lane.b32.xlu0 %v166, 32
    %v1031 = vpop.permute.xlu0 %1030
    %1032 = vrot.lane.b32.xlu0 %v171, 32
    %v1033 = vpop.permute.xlu0 %1032
    %1034 = vrot.lane.b32.xlu0 %v174, 32
    %v1035 = vpop.permute.xlu0 %1034
    %1036 = vrot.lane.b32.xlu0 %v179, 32
    %v1037 = vpop.permute.xlu0 %1036
    %1038 = vrot.lane.b32.xlu0 %v182, 32
    %v1039 = vpop.permute.xlu0 %1038
    %1040 = vrot.lane.b32.xlu0 %v187, 32
    %v1041 = vpop.permute.xlu0 %1040
    %1042 = vrot.lane.b32.xlu0 %v190, 32
    %v1043 = vpop.permute.xlu0 %1042
    %1044 = vrot.lane.b32.xlu0 %v195, 32
    %v1045 = vpop.permute.xlu0 %1044
    %1046 = vrot.lane.b32.xlu0 %v198, 32
    %v1047 = vpop.permute.xlu0 %1046
    %1048 = vrot.lane.b32.xlu0 %v203, 32
    %v1049 = vpop.permute.xlu0 %1048
    %1050 = vrot.lane.b32.xlu0 %v206, 32
    %v1051 = vpop.permute.xlu0 %1050
    %1052 = vrot.lane.b32.xlu0 %v211, 32
    %v1053 = vpop.permute.xlu0 %1052
    %1054 = vrot.lane.b32.xlu0 %v214, 32
    %v1055 = vpop.permute.xlu0 %1054
    %1056 = vrot.lane.b32.xlu0 %v219, 32
    %v1057 = vpop.permute.xlu0 %1056
    %1058 = vrot.lane.b32.xlu0 %v222, 32
    %v1059 = vpop.permute.xlu0 %1058
    %1060 = vrot.lane.b32.xlu0 %v227, 32
    %v1061 = vpop.permute.xlu0 %1060
    %1062 = vrot.lane.b32.xlu0 %v230, 32
    %v1063 = vpop.permute.xlu0 %1062
    %1064 = vrot.lane.b32.xlu0 %v235, 32
    %v1065 = vpop.permute.xlu0 %1064
    %1066 = vrot.lane.b32.xlu0 %v238, 32
    %v1067 = vpop.permute.xlu0 %1066
    %1068 = vrot.lane.b32.xlu0 %v243, 32
    %v1069 = vpop.permute.xlu0 %1068
    %1070 = vrot.lane.b32.xlu0 %v246, 32
    %v1071 = vpop.permute.xlu0 %1070
    %1072 = vrot.lane.b32.xlu0 %v251, 32
    %v1073 = vpop.permute.xlu0 %1072
    %1074 = vrot.lane.b32.xlu0 %v254, 32
    %v1075 = vpop.permute.xlu0 %1074
    %1076 = vrot.lane.b32.xlu0 %v259, 32
    %v1077 = vpop.permute.xlu0 %1076
    %1078 = vrot.lane.b32.xlu0 %v262, 32
    %v1079 = vpop.permute.xlu0 %1078
    %1080 = vrot.lane.b32.xlu0 %v267, 32
    %v1081 = vpop.permute.xlu0 %1080
    %1082 = vrot.lane.b32.xlu0 %v270, 32
    %v1083 = vpop.permute.xlu0 %1082
    %1084 = vrot.lane.b32.xlu0 %v275, 32
    %v1085 = vpop.permute.xlu0 %1084
    %1086 = vrot.lane.b32.xlu0 %v278, 32
    %v1087 = vpop.permute.xlu0 %1086
    %1088 = vrot.lane.b32.xlu0 %v283, 32
    %v1089 = vpop.permute.xlu0 %1088
    %1090 = vrot.lane.b32.xlu0 %v286, 32
    %v1091 = vpop.permute.xlu0 %1090
    %v1093 = vsel %vm450, %v1027, 0
    %v1095 = vsel %vm450, %v1029, 0
    %v1097 = vsel %vm450, %v1031, 0
    %v1099 = vsel %vm450, %v1033, 0
    %v1101 = vsel %vm450, %v1035, 0
    %v1103 = vsel %vm450, %v1037, 0
    %v1105 = vsel %vm450, %v1039, 0
    %v1107 = vsel %vm450, %v1041, 0
    %v1109 = vsel %vm450, %v1043, 0
    %v1111 = vsel %vm450, %v1045, 0
    %v1113 = vsel %vm450, %v1047, 0
    %v1115 = vsel %vm450, %v1049, 0
    %v1117 = vsel %vm450, %v1051, 0
    %v1119 = vsel %vm450, %v1053, 0
    %v1121 = vsel %vm450, %v1055, 0
    %v1123 = vsel %vm450, %v1057, 0
    %v1125 = vsel %vm450, %v1059, 0
    %v1127 = vsel %vm450, %v1061, 0
    %v1129 = vsel %vm450, %v1063, 0
    %v1131 = vsel %vm450, %v1065, 0
    %v1133 = vsel %vm450, %v1067, 0
    %v1135 = vsel %vm450, %v1069, 0
    %v1137 = vsel %vm450, %v1071, 0
    %v1139 = vsel %vm450, %v1073, 0
    %v1141 = vsel %vm450, %v1075, 0
    %v1143 = vsel %vm450, %v1077, 0
    %v1145 = vsel %vm450, %v1079, 0
    %v1147 = vsel %vm450, %v1081, 0
    %v1149 = vsel %vm450, %v1083, 0
    %v1151 = vsel %vm450, %v1085, 0
    %v1153 = vsel %vm450, %v1087, 0
    %v1155 = vsel %vm450, %v1089, 0
    %v1157 = vsel %vm450, %v1091, 0
    %1159 = vmatprep.subr.mxu0 0.0
    %1160 = vmatpush1.xpose.msra.mxu0 %v1095
    %1161 = vmatprep.subr.mxu0 0.0
    %1162 = vmatpush1.xpose.msra.mxu0 %v1097
    %1163 = vmatprep.subr.mxu0 0.0
    %1164 = vmatpush1.xpose.msra.mxu0 %v1099
    %1165 = vmatprep.subr.mxu0 0.0
    %1166 = vmatpush1.xpose.msra.mxu0 %v1101
    %1167 = vmatprep.subr.mxu0 0.0
    %1168 = vmatpush1.xpose.msra.mxu0 %v1103
    %1169 = vmatprep.subr.mxu0 0.0
    %1170 = vmatpush1.xpose.msra.mxu0 %v1105
    %1171 = vmatprep.subr.mxu0 0.0
    %1172 = vmatpush1.xpose.msra.mxu0 %v1107
    %1173 = vmatprep.subr.mxu0 0.0
    %1174 = vmatpush1.xpose.msra.mxu0 %v1109
    %1175 = vmatprep.subr.mxu0 0.0
    %1176 = vmatpush1.xpose.msra.mxu0 %v1111
    %1177 = vmatprep.subr.mxu0 0.0
    %1178 = vmatpush1.xpose.msra.mxu0 %v1113
    %1179 = vmatprep.subr.mxu0 0.0
    %1180 = vmatpush1.xpose.msra.mxu0 %v1115
    %1181 = vmatprep.subr.mxu0 0.0
    %1182 = vmatpush1.xpose.msra.mxu0 %v1117
    %1183 = vmatprep.subr.mxu0 0.0
    %1184 = vmatpush1.xpose.msra.mxu0 %v1119
    %1185 = vmatprep.subr.mxu0 0.0
    %1186 = vmatpush1.xpose.msra.mxu0 %v1121
    %1187 = vmatprep.subr.mxu0 0.0
    %1188 = vmatpush1.xpose.msra.mxu0 %v1123
    %1189 = vmatprep.subr.mxu0 0.0
    %1190 = vmatpush1.xpose.msra.mxu0 %v1125
    %1191 = vmatprep.subr.mxu0 0.0
    %1192 = vmatpush1.xpose.msra.mxu0 %v1127
    %1193 = vmatprep.subr.mxu0 0.0
    %1194 = vmatpush1.xpose.msra.mxu0 %v1129
    %1195 = vmatprep.subr.mxu0 0.0
    %1196 = vmatpush1.xpose.msra.mxu0 %v1131
    %1197 = vmatprep.subr.mxu0 0.0
    %1198 = vmatpush1.xpose.msra.mxu0 %v1133
    %1199 = vmatprep.subr.mxu0 0.0
    %1200 = vmatpush1.xpose.msra.mxu0 %v1135
    %1201 = vmatprep.subr.mxu0 0.0
    %1202 = vmatpush1.xpose.msra.mxu0 %v1137
    %1203 = vmatprep.subr.mxu0 0.0
    %1204 = vmatpush1.xpose.msra.mxu0 %v1139
    %1205 = vmatprep.subr.mxu0 0.0
    %1206 = vmatpush1.xpose.msra.mxu0 %v1141
    %1207 = vmatprep.subr.mxu0 0.0
    %1208 = vmatpush1.xpose.msra.mxu0 %v1143
    %1209 = vmatprep.subr.mxu0 0.0
    %1210 = vmatpush1.xpose.msra.mxu0 %v1145
    %1211 = vmatprep.subr.mxu0 0.0
    %1212 = vmatpush1.xpose.msra.mxu0 %v1147
    %1213 = vmatprep.subr.mxu0 0.0
    %1214 = vmatpush1.xpose.msra.mxu0 %v1149
    %1215 = vmatprep.subr.mxu0 0.0
    %1216 = vmatpush1.xpose.msra.mxu0 %v1151
    %1217 = vmatprep.subr.mxu0 0.0
    %1218 = vmatpush1.xpose.msra.mxu0 %v1153
    %1219 = vmatprep.subr.mxu0 0.0
    %1220 = vmatpush1.xpose.msra.mxu0 %v1155
    %1221 = vmatprep.subr.mxu0 0.0
    %1222 = vmatpush1.xpose.msra.mxu0 %v1157
    %1223 = vmatprep.mubr.f32.mxu0 0.0
    %1224 = vmatmul.mubr.f32.gmra.mrb[0].mxu0 %v1093
    %v1225 = vpop.f32.mrb[0].mxu0
    %v1226 = vadd.f32 0.0, %v1225
    %v1227 = vpop.f32.mrb[0].mxu0
    %v1228 = vadd.f32 0.0, %v1227
    %1229 = vdwg.mxu0
    %v1232 = vrot.slane %v820, 7
    %v1233 = vrot.slane %v822, 7
    %v1238 = vrot.slane %v1023, 6
    %v1239 = vrot.slane %v1025, 6
    %v1244 = vrot.slane %v1226, 5
    %v1245 = vrot.slane %v1228, 5
    %vm1248 = vcmask 1040384
    %v1249 = vsel %vm1248, %v617, %v1232
    %v1250 = vsel %vm1248, %v619, %v1233
    %vm1251 = vcmask 1041408
    %v1252 = vsel %vm1251, %v1249, %v1238
    %v1253 = vsel %vm1251, %v1250, %v1239
    %vm1254 = vcmask 1042432
    %v1255 = vsel %vm1254, %v1252, %v1244
    %v1256 = vsel %vm1254, %v1253, %v1245
    %v1259 = vcombine.low %v1255, %v1256
    %1261 = vst [vmem:[#allocation4] sm:$0xff] %v1259
    // Predicated region
    $region14: #{tpu_custom_call.1} parent=1 // pred_check
      _
    $region15: #{tpu_custom_call.1} parent=1 // pred_check_branch
      %1263 = sbr.rel (0) target = $region17
    $region16: #{tpu_custom_call.1} parent=1 // pred_region
      %s1265 = ssub.s32 2048, 2048
      %1266 = vsyncadd [#allocation3], %s1265
      %s1267 = sshll.u32 [#allocation2], 4
      %s1268 = int_to_ptr.vmem [resolvable:$true] %s1267
      %1273 = dma.vmem_to_hbm [thread:$0]  %s1268, 2048, %s3, [#allocation3], 64, 64, 4
    $region17: #{tpu_custom_call.1} parent=1 // pred_fallthru
      _
    // Predicated region
    $region18: #{tpu_custom_call.1} parent=1 // pred_check
      _
    $region19: #{tpu_custom_call.1} parent=1 // pred_check_branch
      %1275 = sbr.rel (0) target = $region21
    $region20: #{tpu_custom_call.1} parent=1 // pred_region
      %s1277 = ssub.s32 128, 128
      %1278 = vsyncadd [#allocation5], %s1277
      %s1280 = sshll.u32 [#allocation4], 4
      %s1281 = int_to_ptr.vmem [resolvable:$true] %s1280
      %1283 = dma.vmem_to_hbm [thread:$0]  %s1281, 128, %s4, [#allocation5]
    $region21: #{tpu_custom_call.1} parent=1 // pred_fallthru
      _
    // Predicated region
    $region22: #{tpu_custom_call.1} parent=1 // pred_check
      _
    $region23: #{tpu_custom_call.1} parent=1 // pred_check_branch
      %1285 = sbr.rel (0) target = $region25
    $region24: #{tpu_custom_call.1} parent=1 // pred_region
      %1286 = dma.done [#allocation3], 2048
    $region25: #{tpu_custom_call.1} parent=1 // pred_fallthru
      _
    // Predicated region
    $region26: #{tpu_custom_call.1} parent=1 // pred_check
      _
    $region27: #{tpu_custom_call.1} parent=1 // pred_check_branch
      %1288 = sbr.rel (0) target = $region29
    $region28: #{tpu_custom_call.1} parent=1 // pred_region
      %1289 = dma.done [#allocation5], 128
    $region29: #{tpu_custom_call.1} parent=1 // pred_fallthru
      _
    %1290 = vsyncpa [#allocation3], 1
    %1291 = vsyncpa [#allocation5], 1

// kernel: tpu_custom_call.1
$region0: #{tpu_custom_call.1}
  #allocation0 [shape = 'u32[]', space=smem, size = 0x4, offset = 0x4, fixed_abs, tag = 'smem constant byte address 0x4 - core index']
  #allocation1 [shape = 'u32[144,128]{1,0:T(1,128)}', space=vmem, size = 0x12000, scoped, tag = 'internal scratch']
  %s0 = inlined_call_operand.vmem [shape: f32[256,64], index: 0, kind: input, shape index: {}]
  %s1 = inlined_call_operand.vmem [shape: f32[64,128], index: 1, kind: input, shape index: {}]
  %s2 = inlined_call_operand.vmem [shape: f32[4,32], index: 2, kind: input, shape index: {}]
  %s3 = inlined_call_operand.hbm [shape: bf16[256,128], index: 3, kind: output, shape index: {0}]
  %s4 = inlined_call_operand.hbm [shape: f32[4,256], index: 4, kind: output, shape index: {1}]
  %5 = xla_tuple %s3, %s4
  %s6 = sld [smem:[#allocation0]]
  $region30: #{tpu_custom_call.1} parent=0
    _
  %s8 = ssub.s32 1, %s6
  %s9 = scalar_select 0, %s8, %s6
  $region1: #{tpu_custom_call.1} parent=0
    #allocation2 [shape = 'u8[65536]{0}', space=vmem, size = 0x10000, scoped, tag = 'output window, operand 0, single buffered']
    #allocation3 [shape = 's32[1]{0}', space=sflag, size = 0x4, scoped, tag = 'scoped memory for tpu_custom_call.1']
    #allocation4 [shape = 'u8[4096]{0}', space=vmem, size = 0x1000, scoped, tag = 'output window, operand 1, single buffered']
    #allocation5 [shape = 's32[1]{0}', space=sflag, size = 0x4, scoped, tag = 'scoped memory for tpu_custom_call.1']
    %10 = vsyncpa [#allocation3], 0
    %11 = vsyncpa [#allocation5], 0
    // Predicated region
    $region2: #{tpu_custom_call.1} parent=1 // pred_check
      _
    $region3: #{tpu_custom_call.1} parent=1 // pred_check_branch
      %13 = sbr.rel (0) target = $region5
    $region4: #{tpu_custom_call.1} parent=1 // pred_region
      _
    $region5: #{tpu_custom_call.1} parent=1 // pred_fallthru
      _
    // Predicated region
    $region6: #{tpu_custom_call.1} parent=1 // pred_check
      _
    $region7: #{tpu_custom_call.1} parent=1 // pred_check_branch
      %15 = sbr.rel (0) target = $region9
    $region8: #{tpu_custom_call.1} parent=1 // pred_region
      _
    $region9: #{tpu_custom_call.1} parent=1 // pred_fallthru
      _
    // Predicated region
    $region10: #{tpu_custom_call.1} parent=1 // pred_check
      _
    $region11: #{tpu_custom_call.1} parent=1 // pred_check_branch
      %17 = sbr.rel (0) target = $region13
    $region12: #{tpu_custom_call.1} parent=1 // pred_region
      _
    $region13: #{tpu_custom_call.1} parent=1 // pred_fallthru
      _
    %v19 = vld [vmem:[%s0] sm:$0xff]
    %v20 = vld [vmem:[%s0 + $0x8] sm:$0xff]
    %v21 = vld [vmem:[%s0 + $0x10] sm:$0xff]
    %v22 = vld [vmem:[%s0 + $0x18] sm:$0xff]
    %v23 = vld [vmem:[%s0 + $0x20] sm:$0xff]
    %v24 = vld [vmem:[%s0 + $0x28] sm:$0xff]
    %v25 = vld [vmem:[%s0 + $0x30] sm:$0xff]
    %v26 = vld [vmem:[%s0 + $0x38] sm:$0xff]
    %v27 = vld [vmem:[%s0 + $0x40] sm:$0xff]
    %v28 = vld [vmem:[%s0 + $0x48] sm:$0xff]
    %v29 = vld [vmem:[%s0 + $0x50] sm:$0xff]
    %v30 = vld [vmem:[%s0 + $0x58] sm:$0xff]
    %v31 = vld [vmem:[%s0 + $0x60] sm:$0xff]
    %v32 = vld [vmem:[%s0 + $0x68] sm:$0xff]
    %v33 = vld [vmem:[%s0 + $0x70] sm:$0xff]
    %v34 = vld [vmem:[%s0 + $0x78] sm:$0xff]
    %v35 = vld [vmem:[%s0 + $0x80] sm:$0xff]
    %v36 = vld [vmem:[%s0 + $0x88] sm:$0xff]
    %v37 = vld [vmem:[%s0 + $0x90] sm:$0xff]
    %v38 = vld [vmem:[%s0 + $0x98] sm:$0xff]
    %v39 = vld [vmem:[%s0 + $0xa0] sm:$0xff]
    %v40 = vld [vmem:[%s0 + $0xa8] sm:$0xff]
    %v41 = vld [vmem:[%s0 + $0xb0] sm:$0xff]
    %v42 = vld [vmem:[%s0 + $0xb8] sm:$0xff]
    %v43 = vld [vmem:[%s0 + $0xc0] sm:$0xff]
    %v44 = vld [vmem:[%s0 + $0xc8] sm:$0xff]
    %v45 = vld [vmem:[%s0 + $0xd0] sm:$0xff]
    %v46 = vld [vmem:[%s0 + $0xd8] sm:$0xff]
    %v47 = vld [vmem:[%s0 + $0xe0] sm:$0xff]
    %v48 = vld [vmem:[%s0 + $0xe8] sm:$0xff]
    %v49 = vld [vmem:[%s0 + $0xf0] sm:$0xff]
    %v50 = vld [vmem:[%s0 + $0xf8] sm:$0xff]
    %v51 = vpack.c.bf16 %v20, %v19
    %v52 = vpack.c.bf16 %v22, %v21
    %v53 = vpack.c.bf16 %v24, %v23
    %v54 = vpack.c.bf16 %v26, %v25
    %v55 = vpack.c.bf16 %v28, %v27
    %v56 = vpack.c.bf16 %v30, %v29
    %v57 = vpack.c.bf16 %v32, %v31
    %v58 = vpack.c.bf16 %v34, %v33
    %v59 = vpack.c.bf16 %v36, %v35
    %v60 = vpack.c.bf16 %v38, %v37
    %v61 = vpack.c.bf16 %v40, %v39
    %v62 = vpack.c.bf16 %v42, %v41
    %v63 = vpack.c.bf16 %v44, %v43
    %v64 = vpack.c.bf16 %v46, %v45
    %v65 = vpack.c.bf16 %v48, %v47
    %v66 = vpack.c.bf16 %v50, %v49
    %v67 = vld [vmem:[%s1] sm:$0xff]
    %v68 = vld [vmem:[%s1 + $0x8] sm:$0xff]
    %v69 = vld [vmem:[%s1 + $0x10] sm:$0xff]
    %v70 = vld [vmem:[%s1 + $0x18] sm:$0xff]
    %v71 = vld [vmem:[%s1 + $0x20] sm:$0xff]
    %v72 = vld [vmem:[%s1 + $0x28] sm:$0xff]
    %v73 = vld [vmem:[%s1 + $0x30] sm:$0xff]
    %v74 = vld [vmem:[%s1 + $0x38] sm:$0xff]
    %v75 = vpack.c.bf16 %v68, %v67
    %v76 = vpack.c.bf16 %v70, %v69
    %v77 = vpack.c.bf16 %v72, %v71
    %v78 = vpack.c.bf16 %v74, %v73
    %vm79 = vcmask 523264
    %v81 = vsel %vm79, %v51, 0
    %v84 = vsel %vm79, %v52, 0
    %v87 = vsel %vm79, %v53, 0
    %v90 = vsel %vm79, %v54, 0
    %v93 = vsel %vm79, %v55, 0
    %v96 = vsel %vm79, %v56, 0
    %v99 = vsel %vm79, %v57, 0
    %v102 = vsel %vm79, %v58, 0
    %v105 = vsel %vm79, %v59, 0
    %v108 = vsel %vm79, %v60, 0
    %v111 = vsel %vm79, %v61, 0
    %v114 = vsel %vm79, %v62, 0
    %v117 = vsel %vm79, %v63, 0
    %v120 = vsel %vm79, %v64, 0
    %v123 = vsel %vm79, %v65, 0
    %v126 = vsel %vm79, %v66, 0
    %128 = vmatprep.subr.bf16.mxu0 0
    %129 = vmatpush1.bf16.msra.mxu0 %v75
    %130 = vmatprep.subr.bf16.mxu0 0
    %131 = vmatpush1.bf16.msra.mxu0 %v76
    %132 = vmatprep.subr.bf16.mxu0 0
    %133 = vmatpush1.bf16.msra.mxu0 %v77
    %134 = vmatprep.subr.bf16.mxu0 0
    %135 = vmatpush1.bf16.msra.mxu0 %v78
    %136 = vmatprep.subr.bf16.mxu0 0
    %137 = vmatpush1.bf16.msra.mxu0 0
    %138 = vmatprep.subr.bf16.mxu0 0
    %139 = vmatpush1.bf16.msra.mxu0 0
    %140 = vmatprep.subr.bf16.mxu0 0
    %141 = vmatpush1.bf16.msra.mxu0 0
    %142 = vmatprep.subr.bf16.mxu0 0
    %143 = vmatpush1.bf16.msra.mxu0 0
    %144 = vmatprep.subr.bf16.mxu0 0
    %145 = vmatpush1.bf16.msra.mxu0 0
    %146 = vmatprep.subr.bf16.mxu0 0
    %147 = vmatpush1.bf16.msra.mxu0 0
    %148 = vmatprep.subr.bf16.mxu0 0
    %149 = vmatpush1.bf16.msra.mxu0 0
    %150 = vmatprep.subr.bf16.mxu0 0
    %151 = vmatpush1.bf16.msra.mxu0 0
    %152 = vmatprep.subr.bf16.mxu0 0
    %153 = vmatpush1.bf16.msra.mxu0 0
    %154 = vmatprep.subr.bf16.mxu0 0
    %155 = vmatpush1.bf16.msra.mxu0 0
    %156 = vmatprep.subr.bf16.mxu0 0
    %157 = vmatpush1.bf16.msra.mxu0 0
    %158 = vmatprep.subr.bf16.mxu0 0
    %159 = vmatpush1.bf16.msra.mxu0 0
    %160 = vmatprep.mubr.bf16.mxu0 0
    %161 = vmatmul.mubr.bf16.gmra.mrb[0].mxu0 %v81
    %v162 = vpop.f32.mrb[0].mxu0
    %v163 = vadd.f32 0.0, %v162
    %v164 = vpop.f32.mrb[0].mxu0
    %v165 = vpop.f32.mrb[0].mxu0
    %v166 = vadd.f32 0.0, %v165
    %v167 = vpop.f32.mrb[0].mxu0
    %168 = vmatprep.mubr.bf16.mxu0 0
    %169 = vmatmul.mubr.bf16.gmra.mrb[0].mxu0 %v84
    %v170 = vpop.f32.mrb[0].mxu0
    %v171 = vadd.f32 0.0, %v170
    %v172 = vpop.f32.mrb[0].mxu0
    %v173 = vpop.f32.mrb[0].mxu0
    %v174 = vadd.f32 0.0, %v173
    %v175 = vpop.f32.mrb[0].mxu0
    %176 = vmatprep.mubr.bf16.mxu0 0
    %177 = vmatmul.mubr.bf16.gmra.mrb[0].mxu0 %v87
    %v178 = vpop.f32.mrb[0].mxu0
    %v179 = vadd.f32 0.0, %v178
    %v180 = vpop.f32.mrb[0].mxu0
    %v181 = vpop.f32.mrb[0].mxu0
    %v182 = vadd.f32 0.0, %v181
    %v183 = vpop.f32.mrb[0].mxu0
    %184 = vmatprep.mubr.bf16.mxu0 0
    %185 = vmatmul.mubr.bf16.gmra.mrb[0].mxu0 %v90
    %v186 = vpop.f32.mrb[0].mxu0
    %v187 = vadd.f32 0.0, %v186
    %v188 = vpop.f32.mrb[0].mxu0
    %v189 = vpop.f32.mrb[0].mxu0
    %v190 = vadd.f32 0.0, %v189
    %v191 = vpop.f32.mrb[0].mxu0
    %192 = vmatprep.mubr.bf16.mxu0 0
    %193 = vmatmul.mubr.bf16.gmra.mrb[0].mxu0 %v93
    %v194 = vpop.f32.mrb[0].mxu0
    %v195 = vadd.f32 0.0, %v194
    %v196 = vpop.f32.mrb[0].mxu0
    %v197 = vpop.f32.mrb[0].mxu0
    %v198 = vadd.f32 0.0, %v197
    %v199 = vpop.f32.mrb[0].mxu0
    %200 = vmatprep.mubr.bf16.mxu0 0
    %201 = vmatmul.mubr.bf16.gmra.mrb[0].mxu0 %v96
    %v202 = vpop.f32.mrb[0].mxu0
    %v203 = vadd.f32 0.0, %v202
    %v204 = vpop.f32.mrb[0].mxu0
    %v205 = vpop.f32.mrb[0].mxu0
    %v206 = vadd.f32 0.0, %v205
    %v207 = vpop.f32.mrb[0].mxu0
    %208 = vmatprep.mubr.bf16.mxu0 0
    %209 = vmatmul.mubr.bf16.gmra.mrb[0].mxu0 %v99
    %v210 = vpop.f32.mrb[0].mxu0
    %v211 = vadd.f32 0.0, %v210
    %v212 = vpop.f32.mrb[0].mxu0
    %v213 = vpop.f32.mrb[0].mxu0
    %v214 = vadd.f32 0.0, %v213
    %v215 = vpop.f32.mrb[0].mxu0
    %216 = vmatprep.mubr.bf16.mxu0 0
    %217 = vmatmul.mubr.bf16.gmra.mrb[0].mxu0 %v102
    %v218 = vpop.f32.mrb[0].mxu0
    %v219 = vadd.f32 0.0, %v218
    %v220 = vpop.f32.mrb[0].mxu0
    %v221 = vpop.f32.mrb[0].mxu0
    %v222 = vadd.f32 0.0, %v221
    %v223 = vpop.f32.mrb[0].mxu0
    %224 = vmatprep.mubr.bf16.mxu0 0
    %225 = vmatmul.mubr.bf16.gmra.mrb[0].mxu0 %v105
    %v226 = vpop.f32.mrb[0].mxu0
    %v227 = vadd.f32 0.0, %v226
    %v228 = vpop.f32.mrb[0].mxu0
    %v229 = vpop.f32.mrb[0].mxu0
    %v230 = vadd.f32 0.0, %v229
    %v231 = vpop.f32.mrb[0].mxu0
    %232 = vmatprep.mubr.bf16.mxu0 0
    %233 = vmatmul.mubr.bf16.gmra.mrb[0].mxu0 %v108
    %v234 = vpop.f32.mrb[0].mxu0
    %v235 = vadd.f32 0.0, %v234
    %v236 = vpop.f32.mrb[0].mxu0
    %v237 = vpop.f32.mrb[0].mxu0
    %v238 = vadd.f32 0.0, %v237
    %v239 = vpop.f32.mrb[0].mxu0
    %240 = vmatprep.mubr.bf16.mxu0 0
    %241 = vmatmul.mubr.bf16.gmra.mrb[0].mxu0 %v111
    %v242 = vpop.f32.mrb[0].mxu0
    %v243 = vadd.f32 0.0, %v242
    %v244 = vpop.f32.mrb[0].mxu0
    %v245 = vpop.f32.mrb[0].mxu0
    %v246 = vadd.f32 0.0, %v245
    %v247 = vpop.f32.mrb[0].mxu0
    %248 = vmatprep.mubr.bf16.mxu0 0
    %249 = vmatmul.mubr.bf16.gmra.mrb[0].mxu0 %v114
    %v250 = vpop.f32.mrb[0].mxu0
    %v251 = vadd.f32 0.0, %v250
    %v252 = vpop.f32.mrb[0].mxu0
    %v253 = vpop.f32.mrb[0].mxu0
    %v254 = vadd.f32 0.0, %v253
    %v255 = vpop.f32.mrb[0].mxu0
    %256 = vmatprep.mubr.bf16.mxu0 0
    %257 = vmatmul.mubr.bf16.gmra.mrb[0].mxu0 %v117
    %v258 = vpop.f32.mrb[0].mxu0
    %v259 = vadd.f32 0.0, %v258
    %v260 = vpop.f32.mrb[0].mxu0
    %v261 = vpop.f32.mrb[0].mxu0
    %v262 = vadd.f32 0.0, %v261
    %v263 = vpop.f32.mrb[0].mxu0
    %264 = vmatprep.mubr.bf16.mxu0 0
    %265 = vmatmul.mubr.bf16.gmra.mrb[0].mxu0 %v120
    %v266 = vpop.f32.mrb[0].mxu0
    %v267 = vadd.f32 0.0, %v266
    %v268 = vpop.f32.mrb[0].mxu0
    %v269 = vpop.f32.mrb[0].mxu0
    %v270 = vadd.f32 0.0, %v269
    %v271 = vpop.f32.mrb[0].mxu0
    %272 = vmatprep.mubr.bf16.mxu0 0
    %273 = vmatmul.mubr.bf16.gmra.mrb[0].mxu0 %v123
    %v274 = vpop.f32.mrb[0].mxu0
    %v275 = vadd.f32 0.0, %v274
    %v276 = vpop.f32.mrb[0].mxu0
    %v277 = vpop.f32.mrb[0].mxu0
    %v278 = vadd.f32 0.0, %v277
    %v279 = vpop.f32.mrb[0].mxu0
    %280 = vmatprep.mubr.bf16.mxu0 0
    %281 = vmatmul.mubr.bf16.gmra.mrb[0].mxu0 %v126
    %v282 = vpop.f32.mrb[0].mxu0
    %v283 = vadd.f32 0.0, %v282
    %v284 = vpop.f32.mrb[0].mxu0
    %v285 = vpop.f32.mrb[0].mxu0
    %v286 = vadd.f32 0.0, %v285
    %v287 = vpop.f32.mrb[0].mxu0
    %288 = vdwg.mxu0
    %v289 = vpack.c.bf16 %v166, %v163
    %v290 = vpack.c.bf16 %v174, %v171
    %v291 = vpack.c.bf16 %v182, %v179
    %v292 = vpack.c.bf16 %v190, %v187
    %v293 = vpack.c.bf16 %v198, %v195
    %v294 = vpack.c.bf16 %v206, %v203
    %v295 = vpack.c.bf16 %v214, %v211
    %v296 = vpack.c.bf16 %v222, %v219
    %v297 = vpack.c.bf16 %v230, %v227
    %v298 = vpack.c.bf16 %v238, %v235
    %v299 = vpack.c.bf16 %v246, %v243
    %v300 = vpack.c.bf16 %v254, %v251
    %v301 = vpack.c.bf16 %v262, %v259
    %v302 = vpack.c.bf16 %v270, %v267
    %v303 = vpack.c.bf16 %v278, %v275
    %v304 = vpack.c.bf16 %v286, %v283
    %v321 = vunpack.c.l.b16 %v289
    %v322 = vunpack.c.h.b16 %v289
    %v323 = vunpack.c.l.b16 %v290
    %v324 = vunpack.c.h.b16 %v290
    %v325 = vunpack.c.l.b16 %v291
    %v326 = vunpack.c.h.b16 %v291
    %v327 = vunpack.c.l.b16 %v292
    %v328 = vunpack.c.h.b16 %v292
    %v329 = vunpack.c.l.b16 %v293
    %v330 = vunpack.c.h.b16 %v293
    %v331 = vunpack.c.l.b16 %v294
    %v332 = vunpack.c.h.b16 %v294
    %v333 = vunpack.c.l.b16 %v295
    %v334 = vunpack.c.h.b16 %v295
    %v335 = vunpack.c.l.b16 %v296
    %v336 = vunpack.c.h.b16 %v296
    %v337 = vunpack.c.l.b16 %v297
    %v338 = vunpack.c.h.b16 %v297
    %v339 = vunpack.c.l.b16 %v298
    %v340 = vunpack.c.h.b16 %v298
    %v341 = vunpack.c.l.b16 %v299
    %v342 = vunpack.c.h.b16 %v299
    %v343 = vunpack.c.l.b16 %v300
    %v344 = vunpack.c.h.b16 %v300
    %v345 = vunpack.c.l.b16 %v301
    %v346 = vunpack.c.h.b16 %v301
    %v347 = vunpack.c.l.b16 %v302
    %v348 = vunpack.c.h.b16 %v302
    %v349 = vunpack.c.l.b16 %v303
    %v350 = vunpack.c.h.b16 %v303
    %v351 = vunpack.c.l.b16 %v304
    %v352 = vunpack.c.h.b16 %v304
    %v353 = vpack.c.b16 %v321, %v321
    %v354 = vpack.c.b16 %v322, %v322
    %v355 = vpack.c.b16 %v323, %v323
    %v356 = vpack.c.b16 %v324, %v324
    %v357 = vpack.c.b16 %v325, %v325
    %v358 = vpack.c.b16 %v326, %v326
    %v359 = vpack.c.b16 %v327, %v327
    %v360 = vpack.c.b16 %v328, %v328
    %v361 = vpack.c.b16 %v329, %v329
    %v362 = vpack.c.b16 %v330, %v330
    %v363 = vpack.c.b16 %v331, %v331
    %v364 = vpack.c.b16 %v332, %v332
    %v365 = vpack.c.b16 %v333, %v333
    %v366 = vpack.c.b16 %v334, %v334
    %v367 = vpack.c.b16 %v335, %v335
    %v368 = vpack.c.b16 %v336, %v336
    %v369 = vpack.c.b16 %v337, %v337
    %v370 = vpack.c.b16 %v338, %v338
    %v371 = vpack.c.b16 %v339, %v339
    %v372 = vpack.c.b16 %v340, %v340
    %v373 = vpack.c.b16 %v341, %v341
    %v374 = vpack.c.b16 %v342, %v342
    %v375 = vpack.c.b16 %v343, %v343
    %v376 = vpack.c.b16 %v344, %v344
    %v377 = vpack.c.b16 %v345, %v345
    %v378 = vpack.c.b16 %v346, %v346
    %v379 = vpack.c.b16 %v347, %v347
    %v380 = vpack.c.b16 %v348, %v348
    %v381 = vpack.c.b16 %v349, %v349
    %v382 = vpack.c.b16 %v350, %v350
    %v383 = vpack.c.b16 %v351, %v351
    %v384 = vpack.c.b16 %v352, %v352
    %417 = vst [vmem:[#allocation2] sm:$0xf] %v353
    %418 = vst [vmem:[#allocation2 + $0x4] sm:$0xf] %v354
    %419 = vst [vmem:[#allocation2 + $0x8] sm:$0xf] %v355
    %420 = vst [vmem:[#allocation2 + $0xc] sm:$0xf] %v356
    %421 = vst [vmem:[#allocation2 + $0x10] sm:$0xf] %v357
    %422 = vst [vmem:[#allocation2 + $0x14] sm:$0xf] %v358
    %423 = vst [vmem:[#allocation2 + $0x18] sm:$0xf] %v359
    %424 = vst [vmem:[#allocation2 + $0x1c] sm:$0xf] %v360
    %425 = vst [vmem:[#allocation2 + $0x20] sm:$0xf] %v361
    %426 = vst [vmem:[#allocation2 + $0x24] sm:$0xf] %v362
    %427 = vst [vmem:[#allocation2 + $0x28] sm:$0xf] %v363
    %428 = vst [vmem:[#allocation2 + $0x2c] sm:$0xf] %v364
    %429 = vst [vmem:[#allocation2 + $0x30] sm:$0xf] %v365
    %430 = vst [vmem:[#allocation2 + $0x34] sm:$0xf] %v366
    %431 = vst [vmem:[#allocation2 + $0x38] sm:$0xf] %v367
    %432 = vst [vmem:[#allocation2 + $0x3c] sm:$0xf] %v368
    %433 = vst [vmem:[#allocation2 + $0x40] sm:$0xf] %v369
    %434 = vst [vmem:[#allocation2 + $0x44] sm:$0xf] %v370
    %435 = vst [vmem:[#allocation2 + $0x48] sm:$0xf] %v371
    %436 = vst [vmem:[#allocation2 + $0x4c] sm:$0xf] %v372
    %437 = vst [vmem:[#allocation2 + $0x50] sm:$0xf] %v373
    %438 = vst [vmem:[#allocation2 + $0x54] sm:$0xf] %v374
    %439 = vst [vmem:[#allocation2 + $0x58] sm:$0xf] %v375
    %440 = vst [vmem:[#allocation2 + $0x5c] sm:$0xf] %v376
    %441 = vst [vmem:[#allocation2 + $0x60] sm:$0xf] %v377
    %442 = vst [vmem:[#allocation2 + $0x64] sm:$0xf] %v378
    %443 = vst [vmem:[#allocation2 + $0x68] sm:$0xf] %v379
    %444 = vst [vmem:[#allocation2 + $0x6c] sm:$0xf] %v380
    %445 = vst [vmem:[#allocation2 + $0x70] sm:$0xf] %v381
    %446 = vst [vmem:[#allocation2 + $0x74] sm:$0xf] %v382
    %447 = vst [vmem:[#allocation2 + $0x78] sm:$0xf] %v383
    %448 = vst [vmem:[#allocation2 + $0x7c] sm:$0xf] %v384
    %v449 = vld [vmem:[%s2] sm:$0x1]
    %vm450 = vcmask 261120
    %v452 = vsel %vm450, %v449, 0
    %v455 = vsel %vm450, %v163, 0
    %v458 = vsel %vm450, %v166, 0
    %v461 = vsel %vm450, %v171, 0
    %v464 = vsel %vm450, %v174, 0
    %v467 = vsel %vm450, %v179, 0
    %v470 = vsel %vm450, %v182, 0
    %v473 = vsel %vm450, %v187, 0
    %v476 = vsel %vm450, %v190, 0
    %v479 = vsel %vm450, %v195, 0
    %v482 = vsel %vm450, %v198, 0
    %v485 = vsel %vm450, %v203, 0
    %v488 = vsel %vm450, %v206, 0
    %v491 = vsel %vm450, %v211, 0
    %v494 = vsel %vm450, %v214, 0
    %v497 = vsel %vm450, %v219, 0
    %v500 = vsel %vm450, %v222, 0
    %v503 = vsel %vm450, %v227, 0
    %v506 = vsel %vm450, %v230, 0
    %v509 = vsel %vm450, %v235, 0
    %v512 = vsel %vm450, %v238, 0
    %v515 = vsel %vm450, %v243, 0
    %v518 = vsel %vm450, %v246, 0
    %v521 = vsel %vm450, %v251, 0
    %v524 = vsel %vm450, %v254, 0
    %v527 = vsel %vm450, %v259, 0
    %v530 = vsel %vm450, %v262, 0
    %v533 = vsel %vm450, %v267, 0
    %v536 = vsel %vm450, %v270, 0
    %v539 = vsel %vm450, %v275, 0
    %v542 = vsel %vm450, %v278, 0
    %v545 = vsel %vm450, %v283, 0
    %v548 = vsel %vm450, %v286, 0
    %550 = vmatprep.subr.mxu0 0.0
    %551 = vmatpush1.xpose.msra.mxu0 %v455
    %552 = vmatprep.subr.mxu0 0.0
    %553 = vmatpush1.xpose.msra.mxu0 %v458
    %554 = vmatprep.subr.mxu0 0.0
    %555 = vmatpush1.xpose.msra.mxu0 %v461
    %556 = vmatprep.subr.mxu0 0.0
    %557 = vmatpush1.xpose.msra.mxu0 %v464
    %558 = vmatprep.subr.mxu0 0.0
    %559 = vmatpush1.xpose.msra.mxu0 %v467
    %560 = vmatprep.subr.mxu0 0.0
    %561 = vmatpush1.xpose.msra.mxu0 %v470
    %562 = vmatprep.subr.mxu0 0.0
    %563 = vmatpush1.xpose.msra.mxu0 %v473
    %564 = vmatprep.subr.mxu0 0.0
    %565 = vmatpush1.xpose.msra.mxu0 %v476
    %566 = vmatprep.subr.mxu0 0.0
    %567 = vmatpush1.xpose.msra.mxu0 %v479
    %568 = vmatprep.subr.mxu0 0.0
    %569 = vmatpush1.xpose.msra.mxu0 %v482
    %570 = vmatprep.subr.mxu0 0.0
    %571 = vmatpush1.xpose.msra.mxu0 %v485
    %572 = vmatprep.subr.mxu0 0.0
    %573 = vmatpush1.xpose.msra.mxu0 %v488
    %574 = vmatprep.subr.mxu0 0.0
    %575 = vmatpush1.xpose.msra.mxu0 %v491
    %576 = vmatprep.subr.mxu0 0.0
    %577 = vmatpush1.xpose.msra.mxu0 %v494
    %578 = vmatprep.subr.mxu0 0.0
    %579 = vmatpush1.xpose.msra.mxu0 %v497
    %580 = vmatprep.subr.mxu0 0.0
    %581 = vmatpush1.xpose.msra.mxu0 %v500
    %582 = vmatprep.subr.mxu0 0.0
    %583 = vmatpush1.xpose.msra.mxu0 %v503
    %584 = vmatprep.subr.mxu0 0.0
    %585 = vmatpush1.xpose.msra.mxu0 %v506
    %586 = vmatprep.subr.mxu0 0.0
    %587 = vmatpush1.xpose.msra.mxu0 %v509
    %588 = vmatprep.subr.mxu0 0.0
    %589 = vmatpush1.xpose.msra.mxu0 %v512
    %590 = vmatprep.subr.mxu0 0.0
    %591 = vmatpush1.xpose.msra.mxu0 %v515
    %592 = vmatprep.subr.mxu0 0.0
    %593 = vmatpush1.xpose.msra.mxu0 %v518
    %594 = vmatprep.subr.mxu0 0.0
    %595 = vmatpush1.xpose.msra.mxu0 %v521
    %596 = vmatprep.subr.mxu0 0.0
    %597 = vmatpush1.xpose.msra.mxu0 %v524
    %598 = vmatprep.subr.mxu0 0.0
    %599 = vmatpush1.xpose.msra.mxu0 %v527
    %600 = vmatprep.subr.mxu0 0.0
    %601 = vmatpush1.xpose.msra.mxu0 %v530
    %602 = vmatprep.subr.mxu0 0.0
    %603 = vmatpush1.xpose.msra.mxu0 %v533
    %604 = vmatprep.subr.mxu0 0.0
    %605 = vmatpush1.xpose.msra.mxu0 %v536
    %606 = vmatprep.subr.mxu0 0.0
    %607 = vmatpush1.xpose.msra.mxu0 %v539
    %608 = vmatprep.subr.mxu0 0.0
    %609 = vmatpush1.xpose.msra.mxu0 %v542
    %610 = vmatprep.subr.mxu0 0.0
    %611 = vmatpush1.xpose.msra.mxu0 %v545
    %612 = vmatprep.subr.mxu0 0.0
    %613 = vmatpush1.xpose.msra.mxu0 %v548
    %614 = vmatprep.mubr.f32.mxu0 0.0
    %615 = vmatmul.mubr.f32.gmra.mrb[0].mxu0 %v452
    %v616 = vpop.f32.mrb[0].mxu0
    %v617 = vadd.f32 0.0, %v616
    %v618 = vpop.f32.mrb[0].mxu0
    %v619 = vadd.f32 0.0, %v618
    %620 = vdwg.mxu0
    %v621 = vld [vmem:[%s2 + $0x1] sm:$0x1]
    %622 = vrot.lane.b32.xlu0 %v163, 96
    %v623 = vpop.permute.xlu0 %622
    %624 = vrot.lane.b32.xlu0 %v166, 96
    %v625 = vpop.permute.xlu0 %624
    %626 = vrot.lane.b32.xlu0 %v171, 96
    %v627 = vpop.permute.xlu0 %626
    %628 = vrot.lane.b32.xlu0 %v174, 96
    %v629 = vpop.permute.xlu0 %628
    %630 = vrot.lane.b32.xlu0 %v179, 96
    %v631 = vpop.permute.xlu0 %630
    %632 = vrot.lane.b32.xlu0 %v182, 96
    %v633 = vpop.permute.xlu0 %632
    %634 = vrot.lane.b32.xlu0 %v187, 96
    %v635 = vpop.permute.xlu0 %634
    %636 = vrot.lane.b32.xlu0 %v190, 96
    %v637 = vpop.permute.xlu0 %636
    %638 = vrot.lane.b32.xlu0 %v195, 96
    %v639 = vpop.permute.xlu0 %638
    %640 = vrot.lane.b32.xlu0 %v198, 96
    %v641 = vpop.permute.xlu0 %640
    %642 = vrot.lane.b32.xlu0 %v203, 96
    %v643 = vpop.permute.xlu0 %642
    %644 = vrot.lane.b32.xlu0 %v206, 96
    %v645 = vpop.permute.xlu0 %644
    %646 = vrot.lane.b32.xlu0 %v211, 96
    %v647 = vpop.permute.xlu0 %646
    %648 = vrot.lane.b32.xlu0 %v214, 96
    %v649 = vpop.permute.xlu0 %648
    %650 = vrot.lane.b32.xlu0 %v219, 96
    %v651 = vpop.permute.xlu0 %650
    %652 = vrot.lane.b32.xlu0 %v222, 96
    %v653 = vpop.permute.xlu0 %652
    %654 = vrot.lane.b32.xlu0 %v227, 96
    %v655 = vpop.permute.xlu0 %654
    %656 = vrot.lane.b32.xlu0 %v230, 96
    %v657 = vpop.permute.xlu0 %656
    %658 = vrot.lane.b32.xlu0 %v235, 96
    %v659 = vpop.permute.xlu0 %658
    %660 = vrot.lane.b32.xlu0 %v238, 96
    %v661 = vpop.permute.xlu0 %660
    %662 = vrot.lane.b32.xlu0 %v243, 96
    %v663 = vpop.permute.xlu0 %662
    %664 = vrot.lane.b32.xlu0 %v246, 96
    %v665 = vpop.permute.xlu0 %664
    %666 = vrot.lane.b32.xlu0 %v251, 96
    %v667 = vpop.permute.xlu0 %666
    %668 = vrot.lane.b32.xlu0 %v254, 96
    %v669 = vpop.permute.xlu0 %668
    %670 = vrot.lane.b32.xlu0 %v259, 96
    %v671 = vpop.permute.xlu0 %670
    %672 = vrot.lane.b32.xlu0 %v262, 96
    %v673 = vpop.permute.xlu0 %672
    %674 = vrot.lane.b32.xlu0 %v267, 96
    %v675 = vpop.permute.xlu0 %674
    %676 = vrot.lane.b32.xlu0 %v270, 96
    %v677 = vpop.permute.xlu0 %676
    %678 = vrot.lane.b32.xlu0 %v275, 96
    %v679 = vpop.permute.xlu0 %678
    %680 = vrot.lane.b32.xlu0 %v278, 96
    %v681 = vpop.permute.xlu0 %680
    %682 = vrot.lane.b32.xlu0 %v283, 96
    %v683 = vpop.permute.xlu0 %682
    %684 = vrot.lane.b32.xlu0 %v286, 96
    %v685 = vpop.permute.xlu0 %684
    %v687 = vsel %vm450, %v621, 0
    %v689 = vsel %vm450, %v623, 0
    %v691 = vsel %vm450, %v625, 0
    %v693 = vsel %vm450, %v627, 0
    %v695 = vsel %vm450, %v629, 0
    %v697 = vsel %vm450, %v631, 0
    %v699 = vsel %vm450, %v633, 0
    %v701 = vsel %vm450, %v635, 0
    %v703 = vsel %vm450, %v637, 0
    %v705 = vsel %vm450, %v639, 0
    %v707 = vsel %vm450, %v641, 0
    %v709 = vsel %vm450, %v643, 0
    %v711 = vsel %vm450, %v645, 0
    %v713 = vsel %vm450, %v647, 0
    %v715 = vsel %vm450, %v649, 0
    %v717 = vsel %vm450, %v651, 0
    %v719 = vsel %vm450, %v653, 0
    %v721 = vsel %vm450, %v655, 0
    %v723 = vsel %vm450, %v657, 0
    %v725 = vsel %vm450, %v659, 0
    %v727 = vsel %vm450, %v661, 0
    %v729 = vsel %vm450, %v663, 0
    %v731 = vsel %vm450, %v665, 0
    %v733 = vsel %vm450, %v667, 0
    %v735 = vsel %vm450, %v669, 0
    %v737 = vsel %vm450, %v671, 0
    %v739 = vsel %vm450, %v673, 0
    %v741 = vsel %vm450, %v675, 0
    %v743 = vsel %vm450, %v677, 0
    %v745 = vsel %vm450, %v679, 0
    %v747 = vsel %vm450, %v681, 0
    %v749 = vsel %vm450, %v683, 0
    %v751 = vsel %vm450, %v685, 0
    %753 = vmatprep.subr.mxu0 0.0
    %754 = vmatpush1.xpose.msra.mxu0 %v689
    %755 = vmatprep.subr.mxu0 0.0
    %756 = vmatpush1.xpose.msra.mxu0 %v691
    %757 = vmatprep.subr.mxu0 0.0
    %758 = vmatpush1.xpose.msra.mxu0 %v693
    %759 = vmatprep.subr.mxu0 0.0
    %760 = vmatpush1.xpose.msra.mxu0 %v695
    %761 = vmatprep.subr.mxu0 0.0
    %762 = vmatpush1.xpose.msra.mxu0 %v697
    %763 = vmatprep.subr.mxu0 0.0
    %764 = vmatpush1.xpose.msra.mxu0 %v699
    %765 = vmatprep.subr.mxu0 0.0
    %766 = vmatpush1.xpose.msra.mxu0 %v701
    %767 = vmatprep.subr.mxu0 0.0
    %768 = vmatpush1.xpose.msra.mxu0 %v703
    %769 = vmatprep.subr.mxu0 0.0
    %770 = vmatpush1.xpose.msra.mxu0 %v705
    %771 = vmatprep.subr.mxu0 0.0
    %772 = vmatpush1.xpose.msra.mxu0 %v707
    %773 = vmatprep.subr.mxu0 0.0
    %774 = vmatpush1.xpose.msra.mxu0 %v709
    %775 = vmatprep.subr.mxu0 0.0
    %776 = vmatpush1.xpose.msra.mxu0 %v711
    %777 = vmatprep.subr.mxu0 0.0
    %778 = vmatpush1.xpose.msra.mxu0 %v713
    %779 = vmatprep.subr.mxu0 0.0
    %780 = vmatpush1.xpose.msra.mxu0 %v715
    %781 = vmatprep.subr.mxu0 0.0
    %782 = vmatpush1.xpose.msra.mxu0 %v717
    %783 = vmatprep.subr.mxu0 0.0
    %784 = vmatpush1.xpose.msra.mxu0 %v719
    %785 = vmatprep.subr.mxu0 0.0
    %786 = vmatpush1.xpose.msra.mxu0 %v721
    %787 = vmatprep.subr.mxu0 0.0
    %788 = vmatpush1.xpose.msra.mxu0 %v723
    %789 = vmatprep.subr.mxu0 0.0
    %790 = vmatpush1.xpose.msra.mxu0 %v725
    %791 = vmatprep.subr.mxu0 0.0
    %792 = vmatpush1.xpose.msra.mxu0 %v727
    %793 = vmatprep.subr.mxu0 0.0
    %794 = vmatpush1.xpose.msra.mxu0 %v729
    %795 = vmatprep.subr.mxu0 0.0
    %796 = vmatpush1.xpose.msra.mxu0 %v731
    %797 = vmatprep.subr.mxu0 0.0
    %798 = vmatpush1.xpose.msra.mxu0 %v733
    %799 = vmatprep.subr.mxu0 0.0
    %800 = vmatpush1.xpose.msra.mxu0 %v735
    %801 = vmatprep.subr.mxu0 0.0
    %802 = vmatpush1.xpose.msra.mxu0 %v737
    %803 = vmatprep.subr.mxu0 0.0
    %804 = vmatpush1.xpose.msra.mxu0 %v739
    %805 = vmatprep.subr.mxu0 0.0
    %806 = vmatpush1.xpose.msra.mxu0 %v741
    %807 = vmatprep.subr.mxu0 0.0
    %808 = vmatpush1.xpose.msra.mxu0 %v743
    %809 = vmatprep.subr.mxu0 0.0
    %810 = vmatpush1.xpose.msra.mxu0 %v745
    %811 = vmatprep.subr.mxu0 0.0
    %812 = vmatpush1.xpose.msra.mxu0 %v747
    %813 = vmatprep.subr.mxu0 0.0
    %814 = vmatpush1.xpose.msra.mxu0 %v749
    %815 = vmatprep.subr.mxu0 0.0
    %816 = vmatpush1.xpose.msra.mxu0 %v751
    %817 = vmatprep.mubr.f32.mxu0 0.0
    %818 = vmatmul.mubr.f32.gmra.mrb[0].mxu0 %v687
    %v819 = vpop.f32.mrb[0].mxu0
    %v820 = vadd.f32 0.0, %v819
    %v821 = vpop.f32.mrb[0].mxu0
    %v822 = vadd.f32 0.0, %v821
    %823 = vdwg.mxu0
    %v824 = vld [vmem:[%s2 + $0x2] sm:$0x1]
    %825 = vrot.lane.b32.xlu0 %v163, 64
    %v826 = vpop.permute.xlu0 %825
    %827 = vrot.lane.b32.xlu0 %v166, 64
    %v828 = vpop.permute.xlu0 %827
    %829 = vrot.lane.b32.xlu0 %v171, 64
    %v830 = vpop.permute.xlu0 %829
    %831 = vrot.lane.b32.xlu0 %v174, 64
    %v832 = vpop.permute.xlu0 %831
    %833 = vrot.lane.b32.xlu0 %v179, 64
    %v834 = vpop.permute.xlu0 %833
    %835 = vrot.lane.b32.xlu0 %v182, 64
    %v836 = vpop.permute.xlu0 %835
    %837 = vrot.lane.b32.xlu0 %v187, 64
    %v838 = vpop.permute.xlu0 %837
    %839 = vrot.lane.b32.xlu0 %v190, 64
    %v840 = vpop.permute.xlu0 %839
    %841 = vrot.lane.b32.xlu0 %v195, 64
    %v842 = vpop.permute.xlu0 %841
    %843 = vrot.lane.b32.xlu0 %v198, 64
    %v844 = vpop.permute.xlu0 %843
    %845 = vrot.lane.b32.xlu0 %v203, 64
    %v846 = vpop.permute.xlu0 %845
    %847 = vrot.lane.b32.xlu0 %v206, 64
    %v848 = vpop.permute.xlu0 %847
    %849 = vrot.lane.b32.xlu0 %v211, 64
    %v850 = vpop.permute.xlu0 %849
    %851 = vrot.lane.b32.xlu0 %v214, 64
    %v852 = vpop.permute.xlu0 %851
    %853 = vrot.lane.b32.xlu0 %v219, 64
    %v854 = vpop.permute.xlu0 %853
    %855 = vrot.lane.b32.xlu0 %v222, 64
    %v856 = vpop.permute.xlu0 %855
    %857 = vrot.lane.b32.xlu0 %v227, 64
    %v858 = vpop.permute.xlu0 %857
    %859 = vrot.lane.b32.xlu0 %v230, 64
    %v860 = vpop.permute.xlu0 %859
    %861 = vrot.lane.b32.xlu0 %v235, 64
    %v862 = vpop.permute.xlu0 %861
    %863 = vrot.lane.b32.xlu0 %v238, 64
    %v864 = vpop.permute.xlu0 %863
    %865 = vrot.lane.b32.xlu0 %v243, 64
    %v866 = vpop.permute.xlu0 %865
    %867 = vrot.lane.b32.xlu0 %v246, 64
    %v868 = vpop.permute.xlu0 %867
    %869 = vrot.lane.b32.xlu0 %v251, 64
    %v870 = vpop.permute.xlu0 %869
    %871 = vrot.lane.b32.xlu0 %v254, 64
    %v872 = vpop.permute.xlu0 %871
    %873 = vrot.lane.b32.xlu0 %v259, 64
    %v874 = vpop.permute.xlu0 %873
    %875 = vrot.lane.b32.xlu0 %v262, 64
    %v876 = vpop.permute.xlu0 %875
    %877 = vrot.lane.b32.xlu0 %v267, 64
    %v878 = vpop.permute.xlu0 %877
    %879 = vrot.lane.b32.xlu0 %v270, 64
    %v880 = vpop.permute.xlu0 %879
    %881 = vrot.lane.b32.xlu0 %v275, 64
    %v882 = vpop.permute.xlu0 %881
    %883 = vrot.lane.b32.xlu0 %v278, 64
    %v884 = vpop.permute.xlu0 %883
    %885 = vrot.lane.b32.xlu0 %v283, 64
    %v886 = vpop.permute.xlu0 %885
    %887 = vrot.lane.b32.xlu0 %v286, 64
    %v888 = vpop.permute.xlu0 %887
    %v890 = vsel %vm450, %v824, 0
    %v892 = vsel %vm450, %v826, 0
    %v894 = vsel %vm450, %v828, 0
    %v896 = vsel %vm450, %v830, 0
    %v898 = vsel %vm450, %v832, 0
    %v900 = vsel %vm450, %v834, 0
    %v902 = vsel %vm450, %v836, 0
    %v904 = vsel %vm450, %v838, 0
    %v906 = vsel %vm450, %v840, 0
    %v908 = vsel %vm450, %v842, 0
    %v910 = vsel %vm450, %v844, 0
    %v912 = vsel %vm450, %v846, 0
    %v914 = vsel %vm450, %v848, 0
    %v916 = vsel %vm450, %v850, 0
    %v918 = vsel %vm450, %v852, 0
    %v920 = vsel %vm450, %v854, 0
    %v922 = vsel %vm450, %v856, 0
    %v924 = vsel %vm450, %v858, 0
    %v926 = vsel %vm450, %v860, 0
    %v928 = vsel %vm450, %v862, 0
    %v930 = vsel %vm450, %v864, 0
    %v932 = vsel %vm450, %v866, 0
    %v934 = vsel %vm450, %v868, 0
    %v936 = vsel %vm450, %v870, 0
    %v938 = vsel %vm450, %v872, 0
    %v940 = vsel %vm450, %v874, 0
    %v942 = vsel %vm450, %v876, 0
    %v944 = vsel %vm450, %v878, 0
    %v946 = vsel %vm450, %v880, 0
    %v948 = vsel %vm450, %v882, 0
    %v950 = vsel %vm450, %v884, 0
    %v952 = vsel %vm450, %v886, 0
    %v954 = vsel %vm450, %v888, 0
    %956 = vmatprep.subr.mxu0 0.0
    %957 = vmatpush1.xpose.msra.mxu0 %v892
    %958 = vmatprep.subr.mxu0 0.0
    %959 = vmatpush1.xpose.msra.mxu0 %v894
    %960 = vmatprep.subr.mxu0 0.0
    %961 = vmatpush1.xpose.msra.mxu0 %v896
    %962 = vmatprep.subr.mxu0 0.0
    %963 = vmatpush1.xpose.msra.mxu0 %v898
    %964 = vmatprep.subr.mxu0 0.0
    %965 = vmatpush1.xpose.msra.mxu0 %v900
    %966 = vmatprep.subr.mxu0 0.0
    %967 = vmatpush1.xpose.msra.mxu0 %v902
    %968 = vmatprep.subr.mxu0 0.0
    %969 = vmatpush1.xpose.msra.mxu0 %v904
    %970 = vmatprep.subr.mxu0 0.0
    %971 = vmatpush1.xpose.msra.mxu0 %v906
    %972 = vmatprep.subr.mxu0 0.0
    %973 = vmatpush1.xpose.msra.mxu0 %v908
    %974 = vmatprep.subr.mxu0 0.0
    %975 = vmatpush1.xpose.msra.mxu0 %v910
    %976 = vmatprep.subr.mxu0 0.0
    %977 = vmatpush1.xpose.msra.mxu0 %v912
    %978 = vmatprep.subr.mxu0 0.0
    %979 = vmatpush1.xpose.msra.mxu0 %v914
    %980 = vmatprep.subr.mxu0 0.0
    %981 = vmatpush1.xpose.msra.mxu0 %v916
    %982 = vmatprep.subr.mxu0 0.0
    %983 = vmatpush1.xpose.msra.mxu0 %v918
    %984 = vmatprep.subr.mxu0 0.0
    %985 = vmatpush1.xpose.msra.mxu0 %v920
    %986 = vmatprep.subr.mxu0 0.0
    %987 = vmatpush1.xpose.msra.mxu0 %v922
    %988 = vmatprep.subr.mxu0 0.0
    %989 = vmatpush1.xpose.msra.mxu0 %v924
    %990 = vmatprep.subr.mxu0 0.0
    %991 = vmatpush1.xpose.msra.mxu0 %v926
    %992 = vmatprep.subr.mxu0 0.0
    %993 = vmatpush1.xpose.msra.mxu0 %v928
    %994 = vmatprep.subr.mxu0 0.0
    %995 = vmatpush1.xpose.msra.mxu0 %v930
    %996 = vmatprep.subr.mxu0 0.0
    %997 = vmatpush1.xpose.msra.mxu0 %v932
    %998 = vmatprep.subr.mxu0 0.0
    %999 = vmatpush1.xpose.msra.mxu0 %v934
    %1000 = vmatprep.subr.mxu0 0.0
    %1001 = vmatpush1.xpose.msra.mxu0 %v936
    %1002 = vmatprep.subr.mxu0 0.0
    %1003 = vmatpush1.xpose.msra.mxu0 %v938
    %1004 = vmatprep.subr.mxu0 0.0
    %1005 = vmatpush1.xpose.msra.mxu0 %v940
    %1006 = vmatprep.subr.mxu0 0.0
    %1007 = vmatpush1.xpose.msra.mxu0 %v942
    %1008 = vmatprep.subr.mxu0 0.0
    %1009 = vmatpush1.xpose.msra.mxu0 %v944
    %1010 = vmatprep.subr.mxu0 0.0
    %1011 = vmatpush1.xpose.msra.mxu0 %v946
    %1012 = vmatprep.subr.mxu0 0.0
    %1013 = vmatpush1.xpose.msra.mxu0 %v948
    %1014 = vmatprep.subr.mxu0 0.0
    %1015 = vmatpush1.xpose.msra.mxu0 %v950
    %1016 = vmatprep.subr.mxu0 0.0
    %1017 = vmatpush1.xpose.msra.mxu0 %v952
    %1018 = vmatprep.subr.mxu0 0.0
    %1019 = vmatpush1.xpose.msra.mxu0 %v954
    %1020 = vmatprep.mubr.f32.mxu0 0.0
    %1021 = vmatmul.mubr.f32.gmra.mrb[0].mxu0 %v890
    %v1022 = vpop.f32.mrb[0].mxu0
    %v1023 = vadd.f32 0.0, %v1022
    %v1024 = vpop.f32.mrb[0].mxu0
    %v1025 = vadd.f32 0.0, %v1024
    %1026 = vdwg.mxu0
    %v1027 = vld [vmem:[%s2 + $0x3] sm:$0x1]
    %1028 = vrot.lane.b32.xlu0 %v163, 32
    %v1029 = vpop.permute.xlu0 %1028
    %1030 = vrot.lane.b32.xlu0 %v166, 32
    %v1031 = vpop.permute.xlu0 %1030
    %1032 = vrot.lane.b32.xlu0 %v171, 32
    %v1033 = vpop.permute.xlu0 %1032
    %1034 = vrot.lane.b32.xlu0 %v174, 32
    %v1035 = vpop.permute.xlu0 %1034
    %1036 = vrot.lane.b32.xlu0 %v179, 32
    %v1037 = vpop.permute.xlu0 %1036
    %1038 = vrot.lane.b32.xlu0 %v182, 32
    %v1039 = vpop.permute.xlu0 %1038
    %1040 = vrot.lane.b32.xlu0 %v187, 32
    %v1041 = vpop.permute.xlu0 %1040
    %1042 = vrot.lane.b32.xlu0 %v190, 32
    %v1043 = vpop.permute.xlu0 %1042
    %1044 = vrot.lane.b32.xlu0 %v195, 32
    %v1045 = vpop.permute.xlu0 %1044
    %1046 = vrot.lane.b32.xlu0 %v198, 32
    %v1047 = vpop.permute.xlu0 %1046
    %1048 = vrot.lane.b32.xlu0 %v203, 32
    %v1049 = vpop.permute.xlu0 %1048
    %1050 = vrot.lane.b32.xlu0 %v206, 32
    %v1051 = vpop.permute.xlu0 %1050
    %1052 = vrot.lane.b32.xlu0 %v211, 32
    %v1053 = vpop.permute.xlu0 %1052
    %1054 = vrot.lane.b32.xlu0 %v214, 32
    %v1055 = vpop.permute.xlu0 %1054
    %1056 = vrot.lane.b32.xlu0 %v219, 32
    %v1057 = vpop.permute.xlu0 %1056
    %1058 = vrot.lane.b32.xlu0 %v222, 32
    %v1059 = vpop.permute.xlu0 %1058
    %1060 = vrot.lane.b32.xlu0 %v227, 32
    %v1061 = vpop.permute.xlu0 %1060
    %1062 = vrot.lane.b32.xlu0 %v230, 32
    %v1063 = vpop.permute.xlu0 %1062
    %1064 = vrot.lane.b32.xlu0 %v235, 32
    %v1065 = vpop.permute.xlu0 %1064
    %1066 = vrot.lane.b32.xlu0 %v238, 32
    %v1067 = vpop.permute.xlu0 %1066
    %1068 = vrot.lane.b32.xlu0 %v243, 32
    %v1069 = vpop.permute.xlu0 %1068
    %1070 = vrot.lane.b32.xlu0 %v246, 32
    %v1071 = vpop.permute.xlu0 %1070
    %1072 = vrot.lane.b32.xlu0 %v251, 32
    %v1073 = vpop.permute.xlu0 %1072
    %1074 = vrot.lane.b32.xlu0 %v254, 32
    %v1075 = vpop.permute.xlu0 %1074
    %1076 = vrot.lane.b32.xlu0 %v259, 32
    %v1077 = vpop.permute.xlu0 %1076
    %1078 = vrot.lane.b32.xlu0 %v262, 32
    %v1079 = vpop.permute.xlu0 %1078
    %1080 = vrot.lane.b32.xlu0 %v267, 32
    %v1081 = vpop.permute.xlu0 %1080
    %1082 = vrot.lane.b32.xlu0 %v270, 32
    %v1083 = vpop.permute.xlu0 %1082
    %1084 = vrot.lane.b32.xlu0 %v275, 32
    %v1085 = vpop.permute.xlu0 %1084
    %1086 = vrot.lane.b32.xlu0 %v278, 32
    %v1087 = vpop.permute.xlu0 %1086
    %1088 = vrot.lane.b32.xlu0 %v283, 32
    %v1089 = vpop.permute.xlu0 %1088
    %1090 = vrot.lane.b32.xlu0 %v286, 32
    %v1091 = vpop.permute.xlu0 %1090
    %v1093 = vsel %vm450, %v1027, 0
    %v1095 = vsel %vm450, %v1029, 0
    %v1097 = vsel %vm450, %v1031, 0
    %v1099 = vsel %vm450, %v1033, 0
    %v1101 = vsel %vm450, %v1035, 0
    %v1103 = vsel %vm450, %v1037, 0
    %v1105 = vsel %vm450, %v1039, 0
    %v1107 = vsel %vm450, %v1041, 0
    %v1109 = vsel %vm450, %v1043, 0
    %v1111 = vsel %vm450, %v1045, 0
    %v1113 = vsel %vm450, %v1047, 0
    %v1115 = vsel %vm450, %v1049, 0
    %v1117 = vsel %vm450, %v1051, 0
    %v1119 = vsel %vm450, %v1053, 0
    %v1121 = vsel %vm450, %v1055, 0
    %v1123 = vsel %vm450, %v1057, 0
    %v1125 = vsel %vm450, %v1059, 0
    %v1127 = vsel %vm450, %v1061, 0
    %v1129 = vsel %vm450, %v1063, 0
    %v1131 = vsel %vm450, %v1065, 0
    %v1133 = vsel %vm450, %v1067, 0
    %v1135 = vsel %vm450, %v1069, 0
    %v1137 = vsel %vm450, %v1071, 0
    %v1139 = vsel %vm450, %v1073, 0
    %v1141 = vsel %vm450, %v1075, 0
    %v1143 = vsel %vm450, %v1077, 0
    %v1145 = vsel %vm450, %v1079, 0
    %v1147 = vsel %vm450, %v1081, 0
    %v1149 = vsel %vm450, %v1083, 0
    %v1151 = vsel %vm450, %v1085, 0
    %v1153 = vsel %vm450, %v1087, 0
    %v1155 = vsel %vm450, %v1089, 0
    %v1157 = vsel %vm450, %v1091, 0
    %1159 = vmatprep.subr.mxu0 0.0
    %1160 = vmatpush1.xpose.msra.mxu0 %v1095
    %1161 = vmatprep.subr.mxu0 0.0
    %1162 = vmatpush1.xpose.msra.mxu0 %v1097
    %1163 = vmatprep.subr.mxu0 0.0
    %1164 = vmatpush1.xpose.msra.mxu0 %v1099
    %1165 = vmatprep.subr.mxu0 0.0
    %1166 = vmatpush1.xpose.msra.mxu0 %v1101
    %1167 = vmatprep.subr.mxu0 0.0
    %1168 = vmatpush1.xpose.msra.mxu0 %v1103
    %1169 = vmatprep.subr.mxu0 0.0
    %1170 = vmatpush1.xpose.msra.mxu0 %v1105
    %1171 = vmatprep.subr.mxu0 0.0
    %1172 = vmatpush1.xpose.msra.mxu0 %v1107
    %1173 = vmatprep.subr.mxu0 0.0
    %1174 = vmatpush1.xpose.msra.mxu0 %v1109
    %1175 = vmatprep.subr.mxu0 0.0
    %1176 = vmatpush1.xpose.msra.mxu0 %v1111
    %1177 = vmatprep.subr.mxu0 0.0
    %1178 = vmatpush1.xpose.msra.mxu0 %v1113
    %1179 = vmatprep.subr.mxu0 0.0
    %1180 = vmatpush1.xpose.msra.mxu0 %v1115
    %1181 = vmatprep.subr.mxu0 0.0
    %1182 = vmatpush1.xpose.msra.mxu0 %v1117
    %1183 = vmatprep.subr.mxu0 0.0
    %1184 = vmatpush1.xpose.msra.mxu0 %v1119
    %1185 = vmatprep.subr.mxu0 0.0
    %1186 = vmatpush1.xpose.msra.mxu0 %v1121
    %1187 = vmatprep.subr.mxu0 0.0
    %1188 = vmatpush1.xpose.msra.mxu0 %v1123
    %1189 = vmatprep.subr.mxu0 0.0
    %1190 = vmatpush1.xpose.msra.mxu0 %v1125
    %1191 = vmatprep.subr.mxu0 0.0
    %1192 = vmatpush1.xpose.msra.mxu0 %v1127
    %1193 = vmatprep.subr.mxu0 0.0
    %1194 = vmatpush1.xpose.msra.mxu0 %v1129
    %1195 = vmatprep.subr.mxu0 0.0
    %1196 = vmatpush1.xpose.msra.mxu0 %v1131
    %1197 = vmatprep.subr.mxu0 0.0
    %1198 = vmatpush1.xpose.msra.mxu0 %v1133
    %1199 = vmatprep.subr.mxu0 0.0
    %1200 = vmatpush1.xpose.msra.mxu0 %v1135
    %1201 = vmatprep.subr.mxu0 0.0
    %1202 = vmatpush1.xpose.msra.mxu0 %v1137
    %1203 = vmatprep.subr.mxu0 0.0
    %1204 = vmatpush1.xpose.msra.mxu0 %v1139
    %1205 = vmatprep.subr.mxu0 0.0
    %1206 = vmatpush1.xpose.msra.mxu0 %v1141
    %1207 = vmatprep.subr.mxu0 0.0
    %1208 = vmatpush1.xpose.msra.mxu0 %v1143
    %1209 = vmatprep.subr.mxu0 0.0
    %1210 = vmatpush1.xpose.msra.mxu0 %v1145
    %1211 = vmatprep.subr.mxu0 0.0
    %1212 = vmatpush1.xpose.msra.mxu0 %v1147
    %1213 = vmatprep.subr.mxu0 0.0
    %1214 = vmatpush1.xpose.msra.mxu0 %v1149
    %1215 = vmatprep.subr.mxu0 0.0
    %1216 = vmatpush1.xpose.msra.mxu0 %v1151
    %1217 = vmatprep.subr.mxu0 0.0
    %1218 = vmatpush1.xpose.msra.mxu0 %v1153
    %1219 = vmatprep.subr.mxu0 0.0
    %1220 = vmatpush1.xpose.msra.mxu0 %v1155
    %1221 = vmatprep.subr.mxu0 0.0
    %1222 = vmatpush1.xpose.msra.mxu0 %v1157
    %1223 = vmatprep.mubr.f32.mxu0 0.0
    %1224 = vmatmul.mubr.f32.gmra.mrb[0].mxu0 %v1093
    %v1225 = vpop.f32.mrb[0].mxu0
    %v1226 = vadd.f32 0.0, %v1225
    %v1227 = vpop.f32.mrb[0].mxu0
    %v1228 = vadd.f32 0.0, %v1227
    %1229 = vdwg.mxu0
    %v1232 = vrot.slane %v820, 7
    %v1233 = vrot.slane %v822, 7
    %v1238 = vrot.slane %v1023, 6
    %v1239 = vrot.slane %v1025, 6
    %v1244 = vrot.slane %v1226, 5
    %v1245 = vrot.slane %v1228, 5
    %vm1248 = vcmask 1040384
    %v1249 = vsel %vm1248, %v617, %v1232
    %v1250 = vsel %vm1248, %v619, %v1233
    %vm1251 = vcmask 1041408
    %v1252 = vsel %vm1251, %v1249, %v1238
    %v1253 = vsel %vm1251, %v1250, %v1239
    %vm1254 = vcmask 1042432
    %v1255 = vsel %vm1254, %v1252, %v1244
    %v1256 = vsel %vm1254, %v1253, %v1245
    %v1259 = vcombine.low %v1255, %v1256
    %1261 = vst [vmem:[#allocation4] sm:$0xff] %v1259
    // Predicated region
    $region14: #{tpu_custom_call.1} parent=1 // pred_check
      _
    $region15: #{tpu_custom_call.1} parent=1 // pred_check_branch
      %1263 = sbr.rel (0) target = $region17
    $region16: #{tpu_custom_call.1} parent=1 // pred_region
      %s1265 = ssub.s32 2048, 2048
      %1266 = vsyncadd [#allocation3], %s1265
      %s1267 = sshll.u32 [#allocation2], 4
      %s1268 = int_to_ptr.vmem [resolvable:$true] %s1267
      %1273 = dma.vmem_to_hbm [thread:$0]  %s1268, 2048, %s3, [#allocation3], 64, 64, 4
    $region17: #{tpu_custom_call.1} parent=1 // pred_fallthru
      _
    // Predicated region
    $region18: #{tpu_custom_call.1} parent=1 // pred_check
      _
    $region19: #{tpu_custom_call.1} parent=1 // pred_check_branch
      %1275 = sbr.rel (0) target = $region21
    $region20: #{tpu_custom_call.1} parent=1 // pred_region
      %s1277 = ssub.s32 128, 128
      %1278 = vsyncadd [#allocation5], %s1277
      %s1280 = sshll.u32 [#allocation4], 4
      %s1281 = int_to_ptr.vmem [resolvable:$true] %s1280
      %1283 = dma.vmem_to_hbm [thread:$0]  %s1281, 128, %s4, [#allocation5]
    $region21: #{tpu_custom_call.1} parent=1 // pred_fallthru
      _
    // Predicated region
    $region22: #{tpu_custom_call.1} parent=1 // pred_check
      _
    $region23: #{tpu_custom_call.1} parent=1 // pred_check_branch
      %1285 = sbr.rel (0) target = $region25
    $region24: #{tpu_custom_call.1} parent=1 // pred_region
      %1286 = dma.done [#allocation3], 2048
    $region25: #{tpu_custom_call.1} parent=1 // pred_fallthru
      _
    // Predicated region
    $region26: #{tpu_custom_call.1} parent=1 // pred_check
      _
    $region27: #{tpu_custom_call.1} parent=1 // pred_check_branch
      %1288 = sbr.rel (0) target = $region29
    $region28: #{tpu_custom_call.1} parent=1 // pred_region
      %1289 = dma.done [#allocation5], 128
    $region29: #{tpu_custom_call.1} parent=1 // pred_fallthru
      _
    %1290 = vsyncpa [#allocation3], 1
    %1291 = vsyncpa [#allocation5], 1

</llo_original>
